<compile_context>
chip_gen: v7x
topology: tpu7x:2x2x1
jax: 0.10.0
libtpu: 0.0.40
codegen_flags: <defaults>
</compile_context>

<pallas_src>
import jax
import jax.numpy as jnp
from jax import lax
from jax.experimental import pallas as pl
from jax.experimental.pallas import tpu as pltpu


def gru_d_kernel(gamma_ref,                 # (seq, B, H) f32  gamma broadcast over H
                 cz_ref, cr_ref, ch_ref,    # (seq, B, H) f32  per-step gate bias contribs
                 h0_ref,                    # (B, H) f32       initial hidden
                 wz_ref, wr_ref, wh_ref,    # (H, H) bf16      s-block gate weights
                 wo_ref, bo_ref,            # (H, O) bf16, (1, O) f32  output head
                 pred_ref, hid_ref):        # outputs (B, O), (B, H)
    seq = gamma_ref.shape[0]

    # Weights are tiny; load once, reused by every unrolled timestep.
    wz = wz_ref[...]
    wr = wr_ref[...]
    wh = wh_ref[...]

    def step(t, h):
        # Serial critical path per step: vmul, MXU dot, sigmoid, vmul,
        # MXU dot, tanh, blend.  Everything else was hoisted to the wrapper.
        s = gamma_ref[t] * h                                        # (B, H) f32
        s_bf = s.astype(jnp.bfloat16)
        z = jax.nn.sigmoid(
            jnp.dot(s_bf, wz, preferred_element_type=jnp.float32) + cz_ref[t])
        r = jax.nn.sigmoid(
            jnp.dot(s_bf, wr, preferred_element_type=jnp.float32) + cr_ref[t])
        h_tilde = jnp.tanh(
            jnp.dot((r * s).astype(jnp.bfloat16), wh,
                    preferred_element_type=jnp.float32) + ch_ref[t])
        return (1.0 - z) * h_tilde + z * s

    unroll = seq if seq <= 16 else 8        # bounded partial unroll for long seq
    h_final = lax.fori_loop(0, seq, step, h0_ref[...], unroll=unroll)

    hid_ref[...] = h_final

    # Output head + softmax (runs once): exact normalization.
    logits = jnp.dot(h_final.astype(jnp.bfloat16), wo_ref[...],
                     preferred_element_type=jnp.float32) + bo_ref[...]
    mx = jnp.max(logits, axis=1, keepdims=True)
    e = jnp.exp(logits - mx)
    pred_ref[...] = e / jnp.sum(e, axis=1, keepdims=True)


def gru_d_forward(inp, hidden, params):
    """inp: [seq, B, 3] f32 (value/mask/dt), hidden: [1, B, H] f32."""
    seq, B, _ = inp.shape
    H = hidden.shape[-1]
    O = params["Wout"].shape[-1]
    gw = params["gamma_w"]
    gb = params["gamma_b"]
    mean = params["mean"]

    x = inp[:, :, 0]                                     # (seq, B) NaN where missing
    m = inp[:, :, 1]
    dt = inp[:, :, 2]

    # --- Hoisted, fully parallel precompute (XLA, outside the recurrence) ---
    gamma = jnp.exp(-jnp.maximum(0.0, gw * dt + gb))     # (seq, B)
    obs = jnp.logical_not(jnp.isnan(x))
    x_clean = jnp.where(obs, x, 0.0)

    # xp[t] = last observed value strictly before step t (init 0): forward fill.
    def ff(carry, xs):
        xt, ot = xs
        return jnp.where(ot, xt, carry), carry
    _, xp = lax.scan(ff, jnp.zeros((B,), jnp.float32), (x_clean, obs))

    imputed = (1.0 - m) * (gamma * xp + mean * (1.0 - gamma))
    x_used = jnp.where(obs, x_clean, imputed)            # (seq, B), NaN-free

    # Split concatenation-ordered gate weights [x | s | m] into row blocks.
    def split(W):
        return W[0, :], W[1:H + 1, :], W[H + 1, :]
    wz_x, wz_s, wz_m = split(params["Wz"])
    wr_x, wr_s, wr_m = split(params["Wr"])
    wh_x, wh_s, wh_m = split(params["Wh"])

    xu = x_used[:, :, None]
    mm = m[:, :, None]
    cz = xu * wz_x + mm * wz_m + params["bz"][0]         # (seq, B, H) f32
    cr = xu * wr_x + mm * wr_m + params["br"][0]
    ch = xu * wh_x + mm * wh_m + params["bh"][0]
    gamma_bh = jnp.broadcast_to(gamma[:, :, None], (seq, B, H)).astype(jnp.float32)

    h0 = hidden[0]                                       # (B, H)

    # bf16 MXU operands (cast once); elementwise math stays f32 in-kernel.
    wz_bf = wz_s.astype(jnp.bfloat16)
    wr_bf = wr_s.astype(jnp.bfloat16)
    wh_bf = wh_s.astype(jnp.bfloat16)
    wo_bf = params["Wout"].astype(jnp.bfloat16)

    slab = pl.BlockSpec((seq, B, H), lambda i: (0, 0, 0))
    sqmat = pl.BlockSpec((H, H), lambda i: (0, 0))

    grid_spec = pltpu.PrefetchScalarGridSpec(
        num_scalar_prefetch=0,
        grid=(1,),
        in_specs=[
            slab, slab, slab, slab,                       # gamma, cz, cr, ch
            pl.BlockSpec((B, H), lambda i: (0, 0)),       # h0
            sqmat, sqmat, sqmat,                          # wz, wr, wh (bf16)
            pl.BlockSpec((H, O), lambda i: (0, 0)),       # Wout (bf16)
            pl.BlockSpec((1, O), lambda i: (0, 0)),       # bout
        ],
        out_specs=[
            pl.BlockSpec((B, O), lambda i: (0, 0)),       # prediction
            pl.BlockSpec((B, H), lambda i: (0, 0)),       # final hidden
        ],
    )

    pred, hid2d = pl.pallas_call(
        gru_d_kernel,
        out_shape=(jax.ShapeDtypeStruct((B, O), jnp.float32),
                   jax.ShapeDtypeStruct((B, H), jnp.float32)),
        grid_spec=grid_spec,
        compiler_params=pltpu.CompilerParams(dimension_semantics=("arbitrary",)),
    )(gamma_bh, cz, cr, ch, h0, wz_bf, wr_bf, wh_bf, wo_bf, params["bout"])

    return pred, hid2d[None]


def gru_d_reference(inp, hidden, params):
    """Pure-JAX f32 reference mirroring the PyTorch forward()."""
    seq, B, _ = inp.shape
    gw, gb, mean = params["gamma_w"], params["gamma_b"], params["mean"]
    h = hidden[0]
    xp = jnp.zeros((B, 1), jnp.float32)
    for t in range(seq):
        x = inp[t, :, 0:1]
        m = inp[t, :, 1:2]
        dt = inp[t, :, 2:3]
        gamma = jnp.exp(-jnp.maximum(0.0, gw * dt + gb))
        obs = jnp.logical_not(jnp.isnan(x))
        imputed = (1.0 - m) * (gamma * xp + mean * (1.0 - gamma))
        x_used = jnp.where(obs, x, imputed)
        xp = jnp.where(obs, x, xp)
        s = gamma * h
        comb = jnp.concatenate([x_used, s, m], axis=1)
        z = jax.nn.sigmoid(comb @ params["Wz"] + params["bz"][0])
        r = jax.nn.sigmoid(comb @ params["Wr"] + params["br"][0])
        chn = jnp.concatenate([x_used, r * s, m], axis=1)
        ht = jnp.tanh(chn @ params["Wh"] + params["bh"][0])
        h = (1.0 - z) * ht + z * s
    logits = h @ params["Wout"] + params["bout"][0]
    pred = jax.nn.softmax(logits, axis=1)
    return pred, h[None]


if __name__ == "__main__":
    # Small, module-consistent shapes: input_dim=3 -> 1 variable with
    # (value, mask, dt) channels; the module's second axis acts as batch.
    seq, B, H, O = 8, 8, 32, 2

    key = jax.random.PRNGKey(0)
    ks = jax.random.split(key, 12)
    scale = 0.1
    params = dict(
        Wz=scale * jax.random.normal(ks[0], (H + 2, H), jnp.float32),
        bz=scale * jax.random.normal(ks[1], (1, H), jnp.float32),
        Wr=scale * jax.random.normal(ks[2], (H + 2, H), jnp.float32),
        br=scale * jax.random.normal(ks[3], (1, H), jnp.float32),
        Wh=scale * jax.random.normal(ks[4], (H + 2, H), jnp.float32),
        bh=scale * jax.random.normal(ks[5], (1, H), jnp.float32),
        Wout=scale * jax.random.normal(ks[6], (H, O), jnp.float32),
        bout=scale * jax.random.normal(ks[7], (1, O), jnp.float32),
        gamma_w=0.5,
        gamma_b=0.1,
        mean=0.25,   # set_mean() scalar
    )

    # Synthetic GRU-D inputs: NaN values where the mask says "missing".
    vals = jax.random.normal(ks[8], (seq, B), jnp.float32)
    mask = (jax.random.uniform(ks[9], (seq, B)) > 0.4).astype(jnp.float32)
    dts = jax.random.uniform(ks[10], (seq, B), dtype=jnp.float32,
                             minval=0.1, maxval=2.0)
    x_vals = jnp.where(mask > 0, vals, jnp.nan)
    inp = jnp.stack([x_vals, mask, dts], axis=-1)          # [seq, B, 3]
    h0 = 0.1 * jax.random.normal(ks[11], (1, B, H), jnp.float32)

    pred, hid = gru_d_forward(inp, h0, params)
    jax.block_until_ready((pred, hid))

    pred_ref, hid_ref = gru_d_reference(inp, h0, params)
    assert pred.shape == (B, O) and hid.shape == (1, B, H)
    assert bool(jnp.all(jnp.isfinite(pred))) and bool(jnp.all(jnp.isfinite(hid)))
    # Tolerance accounts for bf16 MXU operands inside the recurrence.
    assert jnp.allclose(pred, pred_ref, atol=5e-3, rtol=5e-3)
    assert jnp.allclose(hid, hid_ref, atol=5e-3, rtol=5e-3)

    print("KERNEL_OK")
</pallas_src>

<mosaic_0001>
module attributes {stable_mosaic.version = 11 : i64} {
  func.func @gru_d_kernel(%arg0: i32, %arg1: memref<8x8x32xf32, #tpu.memory_space<vmem>>, %arg2: memref<8x8x32xf32, #tpu.memory_space<vmem>>, %arg3: memref<8x8x32xf32, #tpu.memory_space<vmem>>, %arg4: memref<8x8x32xf32, #tpu.memory_space<vmem>>, %arg5: memref<8x32xf32, #tpu.memory_space<vmem>>, %arg6: memref<32x32xbf16, #tpu.memory_space<vmem>>, %arg7: memref<32x32xbf16, #tpu.memory_space<vmem>>, %arg8: memref<32x32xbf16, #tpu.memory_space<vmem>>, %arg9: memref<32x2xbf16, #tpu.memory_space<vmem>>, %arg10: memref<1x2xf32, #tpu.memory_space<vmem>>, %arg11: memref<8x2xf32, #tpu.memory_space<vmem>>, %arg12: memref<8x32xf32, #tpu.memory_space<vmem>>) attributes {dimension_semantics = [#tpu.dimension_semantics<arbitrary>], iteration_bounds = array<i64: 1>, scalar_prefetch = 0 : i64, scratch_operands = 0 : i64, tpu.core_type = #tpu.core_type<tc>, window_params = [{pipeline_mode = #tpu.pipeline_mode<synchronous>, transform_indices = @transform_0, window_bounds = array<i64: 8, 8, 32>}, {pipeline_mode = #tpu.pipeline_mode<synchronous>, transform_indices = @transform_1, window_bounds = array<i64: 8, 8, 32>}, {pipeline_mode = #tpu.pipeline_mode<synchronous>, transform_indices = @transform_2, window_bounds = array<i64: 8, 8, 32>}, {pipeline_mode = #tpu.pipeline_mode<synchronous>, transform_indices = @transform_3, window_bounds = array<i64: 8, 8, 32>}, {pipeline_mode = #tpu.pipeline_mode<synchronous>, transform_indices = @transform_4, window_bounds = array<i64: 8, 32>}, {pipeline_mode = #tpu.pipeline_mode<synchronous>, transform_indices = @transform_5, window_bounds = array<i64: 32, 32>}, {pipeline_mode = #tpu.pipeline_mode<synchronous>, transform_indices = @transform_6, window_bounds = array<i64: 32, 32>}, {pipeline_mode = #tpu.pipeline_mode<synchronous>, transform_indices = @transform_7, window_bounds = array<i64: 32, 32>}, {pipeline_mode = #tpu.pipeline_mode<synchronous>, transform_indices = @transform_8, window_bounds = array<i64: 32, 2>}, {pipeline_mode = #tpu.pipeline_mode<synchronous>, transform_indices = @transform_9, window_bounds = array<i64: 1, 2>}, {pipeline_mode = #tpu.pipeline_mode<synchronous>, transform_indices = @transform_10, window_bounds = array<i64: 8, 2>}, {pipeline_mode = #tpu.pipeline_mode<synchronous>, transform_indices = @transform_11, window_bounds = array<i64: 8, 32>}]} {
    %c0 = arith.constant 0 : index
    %c0_0 = arith.constant 0 : index
    %0 = vector.load %arg6[%c0, %c0_0] : memref<32x32xbf16, #tpu.memory_space<vmem>>, vector<32x32xbf16>
    %c0_1 = arith.constant 0 : index
    %c0_2 = arith.constant 0 : index
    %1 = vector.load %arg7[%c0_1, %c0_2] : memref<32x32xbf16, #tpu.memory_space<vmem>>, vector<32x32xbf16>
    %c0_3 = arith.constant 0 : index
    %c0_4 = arith.constant 0 : index
    %2 = vector.load %arg8[%c0_3, %c0_4] : memref<32x32xbf16, #tpu.memory_space<vmem>>, vector<32x32xbf16>
    %c0_5 = arith.constant 0 : index
    %c0_6 = arith.constant 0 : index
    %3 = vector.load %arg5[%c0_5, %c0_6] : memref<8x32xf32, #tpu.memory_space<vmem>>, vector<8x32xf32>
    %c0_i32 = arith.constant 0 : i32
    %4 = arith.index_cast %c0_i32 : i32 to index
    %c0_7 = arith.constant 0 : index
    %c0_8 = arith.constant 0 : index
    %5 = vector.load %arg1[%4, %c0_7, %c0_8] : memref<8x8x32xf32, #tpu.memory_space<vmem>>, vector<1x8x32xf32>
    %6 = vector.shape_cast %5 : vector<1x8x32xf32> to vector<8x32xf32>
    %7 = arith.mulf %6, %3 : vector<8x32xf32>
    %8 = arith.truncf %7 : vector<8x32xf32> to vector<8x32xbf16>
    %cst = arith.constant dense<0.000000e+00> : vector<8x32xf32>
    %9 = tpu.matmul %8, %0, %cst {dimension_numbers = #tpu.dot_dimension_numbers<[1], [0], [0], [1], [0, 0, 1, 1], [], []>} : vector<8x32xbf16>, vector<32x32xbf16>, vector<8x32xf32> -> vector<8x32xf32>
    %10 = arith.index_cast %c0_i32 : i32 to index
    %c0_9 = arith.constant 0 : index
    %c0_10 = arith.constant 0 : index
    %11 = vector.load %arg2[%10, %c0_9, %c0_10] : memref<8x8x32xf32, #tpu.memory_space<vmem>>, vector<1x8x32xf32>
    %12 = vector.shape_cast %11 : vector<1x8x32xf32> to vector<8x32xf32>
    %13 = arith.addf %9, %12 : vector<8x32xf32>
    %14 = arith.negf %13 : vector<8x32xf32>
    %15 = math.exp %14 : vector<8x32xf32>
    %cst_11 = arith.constant 1.000000e+00 : f32
    %16 = vector.broadcast %cst_11 : f32 to vector<8x32xf32>
    %17 = arith.addf %16, %15 : vector<8x32xf32>
    %18 = arith.divf %16, %17 : vector<8x32xf32>
    %cst_12 = arith.constant dense<0.000000e+00> : vector<8x32xf32>
    %19 = tpu.matmul %8, %1, %cst_12 {dimension_numbers = #tpu.dot_dimension_numbers<[1], [0], [0], [1], [0, 0, 1, 1], [], []>} : vector<8x32xbf16>, vector<32x32xbf16>, vector<8x32xf32> -> vector<8x32xf32>
    %20 = arith.index_cast %c0_i32 : i32 to index
    %c0_13 = arith.constant 0 : index
    %c0_14 = arith.constant 0 : index
    %21 = vector.load %arg3[%20, %c0_13, %c0_14] : memref<8x8x32xf32, #tpu.memory_space<vmem>>, vector<1x8x32xf32>
    %22 = vector.shape_cast %21 : vector<1x8x32xf32> to vector<8x32xf32>
    %23 = arith.addf %19, %22 : vector<8x32xf32>
    %24 = arith.negf %23 : vector<8x32xf32>
    %25 = math.exp %24 : vector<8x32xf32>
    %cst_15 = arith.constant 1.000000e+00 : f32
    %26 = vector.broadcast %cst_15 : f32 to vector<8x32xf32>
    %27 = arith.addf %26, %25 : vector<8x32xf32>
    %28 = arith.divf %26, %27 : vector<8x32xf32>
    %29 = arith.mulf %28, %7 : vector<8x32xf32>
    %30 = arith.truncf %29 : vector<8x32xf32> to vector<8x32xbf16>
    %cst_16 = arith.constant dense<0.000000e+00> : vector<8x32xf32>
    %31 = tpu.matmul %30, %2, %cst_16 {dimension_numbers = #tpu.dot_dimension_numbers<[1], [0], [0], [1], [0, 0, 1, 1], [], []>} : vector<8x32xbf16>, vector<32x32xbf16>, vector<8x32xf32> -> vector<8x32xf32>
    %32 = arith.index_cast %c0_i32 : i32 to index
    %c0_17 = arith.constant 0 : index
    %c0_18 = arith.constant 0 : index
    %33 = vector.load %arg4[%32, %c0_17, %c0_18] : memref<8x8x32xf32, #tpu.memory_space<vmem>>, vector<1x8x32xf32>
    %34 = vector.shape_cast %33 : vector<1x8x32xf32> to vector<8x32xf32>
    %35 = arith.addf %31, %34 : vector<8x32xf32>
    %36 = math.tanh %35 : vector<8x32xf32>
    %cst_19 = arith.constant 1.000000e+00 : f32
    %37 = vector.broadcast %cst_19 : f32 to vector<8x32xf32>
    %38 = arith.subf %37, %18 : vector<8x32xf32>
    %39 = arith.mulf %38, %36 : vector<8x32xf32>
    %40 = arith.mulf %18, %7 : vector<8x32xf32>
    %41 = arith.addf %39, %40 : vector<8x32xf32>
    %c1_i32 = arith.constant 1 : i32
    %42 = arith.index_cast %c1_i32 : i32 to index
    %c0_20 = arith.constant 0 : index
    %c0_21 = arith.constant 0 : index
    %43 = vector.load %arg1[%42, %c0_20, %c0_21] : memref<8x8x32xf32, #tpu.memory_space<vmem>>, vector<1x8x32xf32>
    %44 = vector.shape_cast %43 : vector<1x8x32xf32> to vector<8x32xf32>
    %45 = arith.mulf %44, %41 : vector<8x32xf32>
    %46 = arith.truncf %45 : vector<8x32xf32> to vector<8x32xbf16>
    %cst_22 = arith.constant dense<0.000000e+00> : vector<8x32xf32>
    %47 = tpu.matmul %46, %0, %cst_22 {dimension_numbers = #tpu.dot_dimension_numbers<[1], [0], [0], [1], [0, 0, 1, 1], [], []>} : vector<8x32xbf16>, vector<32x32xbf16>, vector<8x32xf32> -> vector<8x32xf32>
    %48 = arith.index_cast %c1_i32 : i32 to index
    %c0_23 = arith.constant 0 : index
    %c0_24 = arith.constant 0 : index
    %49 = vector.load %arg2[%48, %c0_23, %c0_24] : memref<8x8x32xf32, #tpu.memory_space<vmem>>, vector<1x8x32xf32>
    %50 = vector.shape_cast %49 : vector<1x8x32xf32> to vector<8x32xf32>
    %51 = arith.addf %47, %50 : vector<8x32xf32>
    %52 = arith.negf %51 : vector<8x32xf32>
    %53 = math.exp %52 : vector<8x32xf32>
    %cst_25 = arith.constant 1.000000e+00 : f32
    %54 = vector.broadcast %cst_25 : f32 to vector<8x32xf32>
    %55 = arith.addf %54, %53 : vector<8x32xf32>
    %56 = arith.divf %54, %55 : vector<8x32xf32>
    %cst_26 = arith.constant dense<0.000000e+00> : vector<8x32xf32>
    %57 = tpu.matmul %46, %1, %cst_26 {dimension_numbers = #tpu.dot_dimension_numbers<[1], [0], [0], [1], [0, 0, 1, 1], [], []>} : vector<8x32xbf16>, vector<32x32xbf16>, vector<8x32xf32> -> vector<8x32xf32>
    %58 = arith.index_cast %c1_i32 : i32 to index
    %c0_27 = arith.constant 0 : index
    %c0_28 = arith.constant 0 : index
    %59 = vector.load %arg3[%58, %c0_27, %c0_28] : memref<8x8x32xf32, #tpu.memory_space<vmem>>, vector<1x8x32xf32>
    %60 = vector.shape_cast %59 : vector<1x8x32xf32> to vector<8x32xf32>
    %61 = arith.addf %57, %60 : vector<8x32xf32>
    %62 = arith.negf %61 : vector<8x32xf32>
    %63 = math.exp %62 : vector<8x32xf32>
    %cst_29 = arith.constant 1.000000e+00 : f32
    %64 = vector.broadcast %cst_29 : f32 to vector<8x32xf32>
    %65 = arith.addf %64, %63 : vector<8x32xf32>
    %66 = arith.divf %64, %65 : vector<8x32xf32>
    %67 = arith.mulf %66, %45 : vector<8x32xf32>
    %68 = arith.truncf %67 : vector<8x32xf32> to vector<8x32xbf16>
    %cst_30 = arith.constant dense<0.000000e+00> : vector<8x32xf32>
    %69 = tpu.matmul %68, %2, %cst_30 {dimension_numbers = #tpu.dot_dimension_numbers<[1], [0], [0], [1], [0, 0, 1, 1], [], []>} : vector<8x32xbf16>, vector<32x32xbf16>, vector<8x32xf32> -> vector<8x32xf32>
    %70 = arith.index_cast %c1_i32 : i32 to index
    %c0_31 = arith.constant 0 : index
    %c0_32 = arith.constant 0 : index
    %71 = vector.load %arg4[%70, %c0_31, %c0_32] : memref<8x8x32xf32, #tpu.memory_space<vmem>>, vector<1x8x32xf32>
    %72 = vector.shape_cast %71 : vector<1x8x32xf32> to vector<8x32xf32>
    %73 = arith.addf %69, %72 : vector<8x32xf32>
    %74 = math.tanh %73 : vector<8x32xf32>
    %cst_33 = arith.constant 1.000000e+00 : f32
    %75 = vector.broadcast %cst_33 : f32 to vector<8x32xf32>
    %76 = arith.subf %75, %56 : vector<8x32xf32>
    %77 = arith.mulf %76, %74 : vector<8x32xf32>
    %78 = arith.mulf %56, %45 : vector<8x32xf32>
    %79 = arith.addf %77, %78 : vector<8x32xf32>
    %c2_i32 = arith.constant 2 : i32
    %80 = arith.index_cast %c2_i32 : i32 to index
    %c0_34 = arith.constant 0 : index
    %c0_35 = arith.constant 0 : index
    %81 = vector.load %arg1[%80, %c0_34, %c0_35] : memref<8x8x32xf32, #tpu.memory_space<vmem>>, vector<1x8x32xf32>
    %82 = vector.shape_cast %81 : vector<1x8x32xf32> to vector<8x32xf32>
    %83 = arith.mulf %82, %79 : vector<8x32xf32>
    %84 = arith.truncf %83 : vector<8x32xf32> to vector<8x32xbf16>
    %cst_36 = arith.constant dense<0.000000e+00> : vector<8x32xf32>
    %85 = tpu.matmul %84, %0, %cst_36 {dimension_numbers = #tpu.dot_dimension_numbers<[1], [0], [0], [1], [0, 0, 1, 1], [], []>} : vector<8x32xbf16>, vector<32x32xbf16>, vector<8x32xf32> -> vector<8x32xf32>
    %86 = arith.index_cast %c2_i32 : i32 to index
    %c0_37 = arith.constant 0 : index
    %c0_38 = arith.constant 0 : index
    %87 = vector.load %arg2[%86, %c0_37, %c0_38] : memref<8x8x32xf32, #tpu.memory_space<vmem>>, vector<1x8x32xf32>
    %88 = vector.shape_cast %87 : vector<1x8x32xf32> to vector<8x32xf32>
    %89 = arith.addf %85, %88 : vector<8x32xf32>
    %90 = arith.negf %89 : vector<8x32xf32>
    %91 = math.exp %90 : vector<8x32xf32>
    %cst_39 = arith.constant 1.000000e+00 : f32
    %92 = vector.broadcast %cst_39 : f32 to vector<8x32xf32>
    %93 = arith.addf %92, %91 : vector<8x32xf32>
    %94 = arith.divf %92, %93 : vector<8x32xf32>
    %cst_40 = arith.constant dense<0.000000e+00> : vector<8x32xf32>
    %95 = tpu.matmul %84, %1, %cst_40 {dimension_numbers = #tpu.dot_dimension_numbers<[1], [0], [0], [1], [0, 0, 1, 1], [], []>} : vector<8x32xbf16>, vector<32x32xbf16>, vector<8x32xf32> -> vector<8x32xf32>
    %96 = arith.index_cast %c2_i32 : i32 to index
    %c0_41 = arith.constant 0 : index
    %c0_42 = arith.constant 0 : index
    %97 = vector.load %arg3[%96, %c0_41, %c0_42] : memref<8x8x32xf32, #tpu.memory_space<vmem>>, vector<1x8x32xf32>
    %98 = vector.shape_cast %97 : vector<1x8x32xf32> to vector<8x32xf32>
    %99 = arith.addf %95, %98 : vector<8x32xf32>
    %100 = arith.negf %99 : vector<8x32xf32>
    %101 = math.exp %100 : vector<8x32xf32>
    %cst_43 = arith.constant 1.000000e+00 : f32
    %102 = vector.broadcast %cst_43 : f32 to vector<8x32xf32>
    %103 = arith.addf %102, %101 : vector<8x32xf32>
    %104 = arith.divf %102, %103 : vector<8x32xf32>
    %105 = arith.mulf %104, %83 : vector<8x32xf32>
    %106 = arith.truncf %105 : vector<8x32xf32> to vector<8x32xbf16>
    %cst_44 = arith.constant dense<0.000000e+00> : vector<8x32xf32>
    %107 = tpu.matmul %106, %2, %cst_44 {dimension_numbers = #tpu.dot_dimension_numbers<[1], [0], [0], [1], [0, 0, 1, 1], [], []>} : vector<8x32xbf16>, vector<32x32xbf16>, vector<8x32xf32> -> vector<8x32xf32>
    %108 = arith.index_cast %c2_i32 : i32 to index
    %c0_45 = arith.constant 0 : index
    %c0_46 = arith.constant 0 : index
    %109 = vector.load %arg4[%108, %c0_45, %c0_46] : memref<8x8x32xf32, #tpu.memory_space<vmem>>, vector<1x8x32xf32>
    %110 = vector.shape_cast %109 : vector<1x8x32xf32> to vector<8x32xf32>
    %111 = arith.addf %107, %110 : vector<8x32xf32>
    %112 = math.tanh %111 : vector<8x32xf32>
    %cst_47 = arith.constant 1.000000e+00 : f32
    %113 = vector.broadcast %cst_47 : f32 to vector<8x32xf32>
    %114 = arith.subf %113, %94 : vector<8x32xf32>
    %115 = arith.mulf %114, %112 : vector<8x32xf32>
    %116 = arith.mulf %94, %83 : vector<8x32xf32>
    %117 = arith.addf %115, %116 : vector<8x32xf32>
    %c3_i32 = arith.constant 3 : i32
    %118 = arith.index_cast %c3_i32 : i32 to index
    %c0_48 = arith.constant 0 : index
    %c0_49 = arith.constant 0 : index
    %119 = vector.load %arg1[%118, %c0_48, %c0_49] : memref<8x8x32xf32, #tpu.memory_space<vmem>>, vector<1x8x32xf32>
    %120 = vector.shape_cast %119 : vector<1x8x32xf32> to vector<8x32xf32>
    %121 = arith.mulf %120, %117 : vector<8x32xf32>
    %122 = arith.truncf %121 : vector<8x32xf32> to vector<8x32xbf16>
    %cst_50 = arith.constant dense<0.000000e+00> : vector<8x32xf32>
    %123 = tpu.matmul %122, %0, %cst_50 {dimension_numbers = #tpu.dot_dimension_numbers<[1], [0], [0], [1], [0, 0, 1, 1], [], []>} : vector<8x32xbf16>, vector<32x32xbf16>, vector<8x32xf32> -> vector<8x32xf32>
    %124 = arith.index_cast %c3_i32 : i32 to index
    %c0_51 = arith.constant 0 : index
    %c0_52 = arith.constant 0 : index
    %125 = vector.load %arg2[%124, %c0_51, %c0_52] : memref<8x8x32xf32, #tpu.memory_space<vmem>>, vector<1x8x32xf32>
    %126 = vector.shape_cast %125 : vector<1x8x32xf32> to vector<8x32xf32>
    %127 = arith.addf %123, %126 : vector<8x32xf32>
    %128 = arith.negf %127 : vector<8x32xf32>
    %129 = math.exp %128 : vector<8x32xf32>
    %cst_53 = arith.constant 1.000000e+00 : f32
    %130 = vector.broadcast %cst_53 : f32 to vector<8x32xf32>
    %131 = arith.addf %130, %129 : vector<8x32xf32>
    %132 = arith.divf %130, %131 : vector<8x32xf32>
    %cst_54 = arith.constant dense<0.000000e+00> : vector<8x32xf32>
    %133 = tpu.matmul %122, %1, %cst_54 {dimension_numbers = #tpu.dot_dimension_numbers<[1], [0], [0], [1], [0, 0, 1, 1], [], []>} : vector<8x32xbf16>, vector<32x32xbf16>, vector<8x32xf32> -> vector<8x32xf32>
    %134 = arith.index_cast %c3_i32 : i32 to index
    %c0_55 = arith.constant 0 : index
    %c0_56 = arith.constant 0 : index
    %135 = vector.load %arg3[%134, %c0_55, %c0_56] : memref<8x8x32xf32, #tpu.memory_space<vmem>>, vector<1x8x32xf32>
    %136 = vector.shape_cast %135 : vector<1x8x32xf32> to vector<8x32xf32>
    %137 = arith.addf %133, %136 : vector<8x32xf32>
    %138 = arith.negf %137 : vector<8x32xf32>
    %139 = math.exp %138 : vector<8x32xf32>
    %cst_57 = arith.constant 1.000000e+00 : f32
    %140 = vector.broadcast %cst_57 : f32 to vector<8x32xf32>
    %141 = arith.addf %140, %139 : vector<8x32xf32>
    %142 = arith.divf %140, %141 : vector<8x32xf32>
    %143 = arith.mulf %142, %121 : vector<8x32xf32>
    %144 = arith.truncf %143 : vector<8x32xf32> to vector<8x32xbf16>
    %cst_58 = arith.constant dense<0.000000e+00> : vector<8x32xf32>
    %145 = tpu.matmul %144, %2, %cst_58 {dimension_numbers = #tpu.dot_dimension_numbers<[1], [0], [0], [1], [0, 0, 1, 1], [], []>} : vector<8x32xbf16>, vector<32x32xbf16>, vector<8x32xf32> -> vector<8x32xf32>
    %146 = arith.index_cast %c3_i32 : i32 to index
    %c0_59 = arith.constant 0 : index
    %c0_60 = arith.constant 0 : index
    %147 = vector.load %arg4[%146, %c0_59, %c0_60] : memref<8x8x32xf32, #tpu.memory_space<vmem>>, vector<1x8x32xf32>
    %148 = vector.shape_cast %147 : vector<1x8x32xf32> to vector<8x32xf32>
    %149 = arith.addf %145, %148 : vector<8x32xf32>
    %150 = math.tanh %149 : vector<8x32xf32>
    %cst_61 = arith.constant 1.000000e+00 : f32
    %151 = vector.broadcast %cst_61 : f32 to vector<8x32xf32>
    %152 = arith.subf %151, %132 : vector<8x32xf32>
    %153 = arith.mulf %152, %150 : vector<8x32xf32>
    %154 = arith.mulf %132, %121 : vector<8x32xf32>
    %155 = arith.addf %153, %154 : vector<8x32xf32>
    %c4_i32 = arith.constant 4 : i32
    %156 = arith.index_cast %c4_i32 : i32 to index
    %c0_62 = arith.constant 0 : index
    %c0_63 = arith.constant 0 : index
    %157 = vector.load %arg1[%156, %c0_62, %c0_63] : memref<8x8x32xf32, #tpu.memory_space<vmem>>, vector<1x8x32xf32>
    %158 = vector.shape_cast %157 : vector<1x8x32xf32> to vector<8x32xf32>
    %159 = arith.mulf %158, %155 : vector<8x32xf32>
    %160 = arith.truncf %159 : vector<8x32xf32> to vector<8x32xbf16>
    %cst_64 = arith.constant dense<0.000000e+00> : vector<8x32xf32>
    %161 = tpu.matmul %160, %0, %cst_64 {dimension_numbers = #tpu.dot_dimension_numbers<[1], [0], [0], [1], [0, 0, 1, 1], [], []>} : vector<8x32xbf16>, vector<32x32xbf16>, vector<8x32xf32> -> vector<8x32xf32>
    %162 = arith.index_cast %c4_i32 : i32 to index
    %c0_65 = arith.constant 0 : index
    %c0_66 = arith.constant 0 : index
    %163 = vector.load %arg2[%162, %c0_65, %c0_66] : memref<8x8x32xf32, #tpu.memory_space<vmem>>, vector<1x8x32xf32>
    %164 = vector.shape_cast %163 : vector<1x8x32xf32> to vector<8x32xf32>
    %165 = arith.addf %161, %164 : vector<8x32xf32>
    %166 = arith.negf %165 : vector<8x32xf32>
    %167 = math.exp %166 : vector<8x32xf32>
    %cst_67 = arith.constant 1.000000e+00 : f32
    %168 = vector.broadcast %cst_67 : f32 to vector<8x32xf32>
    %169 = arith.addf %168, %167 : vector<8x32xf32>
    %170 = arith.divf %168, %169 : vector<8x32xf32>
    %cst_68 = arith.constant dense<0.000000e+00> : vector<8x32xf32>
    %171 = tpu.matmul %160, %1, %cst_68 {dimension_numbers = #tpu.dot_dimension_numbers<[1], [0], [0], [1], [0, 0, 1, 1], [], []>} : vector<8x32xbf16>, vector<32x32xbf16>, vector<8x32xf32> -> vector<8x32xf32>
    %172 = arith.index_cast %c4_i32 : i32 to index
    %c0_69 = arith.constant 0 : index
    %c0_70 = arith.constant 0 : index
    %173 = vector.load %arg3[%172, %c0_69, %c0_70] : memref<8x8x32xf32, #tpu.memory_space<vmem>>, vector<1x8x32xf32>
    %174 = vector.shape_cast %173 : vector<1x8x32xf32> to vector<8x32xf32>
    %175 = arith.addf %171, %174 : vector<8x32xf32>
    %176 = arith.negf %175 : vector<8x32xf32>
    %177 = math.exp %176 : vector<8x32xf32>
    %cst_71 = arith.constant 1.000000e+00 : f32
    %178 = vector.broadcast %cst_71 : f32 to vector<8x32xf32>
    %179 = arith.addf %178, %177 : vector<8x32xf32>
    %180 = arith.divf %178, %179 : vector<8x32xf32>
    %181 = arith.mulf %180, %159 : vector<8x32xf32>
    %182 = arith.truncf %181 : vector<8x32xf32> to vector<8x32xbf16>
    %cst_72 = arith.constant dense<0.000000e+00> : vector<8x32xf32>
    %183 = tpu.matmul %182, %2, %cst_72 {dimension_numbers = #tpu.dot_dimension_numbers<[1], [0], [0], [1], [0, 0, 1, 1], [], []>} : vector<8x32xbf16>, vector<32x32xbf16>, vector<8x32xf32> -> vector<8x32xf32>
    %184 = arith.index_cast %c4_i32 : i32 to index
    %c0_73 = arith.constant 0 : index
    %c0_74 = arith.constant 0 : index
    %185 = vector.load %arg4[%184, %c0_73, %c0_74] : memref<8x8x32xf32, #tpu.memory_space<vmem>>, vector<1x8x32xf32>
    %186 = vector.shape_cast %185 : vector<1x8x32xf32> to vector<8x32xf32>
    %187 = arith.addf %183, %186 : vector<8x32xf32>
    %188 = math.tanh %187 : vector<8x32xf32>
    %cst_75 = arith.constant 1.000000e+00 : f32
    %189 = vector.broadcast %cst_75 : f32 to vector<8x32xf32>
    %190 = arith.subf %189, %170 : vector<8x32xf32>
    %191 = arith.mulf %190, %188 : vector<8x32xf32>
    %192 = arith.mulf %170, %159 : vector<8x32xf32>
    %193 = arith.addf %191, %192 : vector<8x32xf32>
    %c5_i32 = arith.constant 5 : i32
    %194 = arith.index_cast %c5_i32 : i32 to index
    %c0_76 = arith.constant 0 : index
    %c0_77 = arith.constant 0 : index
    %195 = vector.load %arg1[%194, %c0_76, %c0_77] : memref<8x8x32xf32, #tpu.memory_space<vmem>>, vector<1x8x32xf32>
    %196 = vector.shape_cast %195 : vector<1x8x32xf32> to vector<8x32xf32>
    %197 = arith.mulf %196, %193 : vector<8x32xf32>
    %198 = arith.truncf %197 : vector<8x32xf32> to vector<8x32xbf16>
    %cst_78 = arith.constant dense<0.000000e+00> : vector<8x32xf32>
    %199 = tpu.matmul %198, %0, %cst_78 {dimension_numbers = #tpu.dot_dimension_numbers<[1], [0], [0], [1], [0, 0, 1, 1], [], []>} : vector<8x32xbf16>, vector<32x32xbf16>, vector<8x32xf32> -> vector<8x32xf32>
    %200 = arith.index_cast %c5_i32 : i32 to index
    %c0_79 = arith.constant 0 : index
    %c0_80 = arith.constant 0 : index
    %201 = vector.load %arg2[%200, %c0_79, %c0_80] : memref<8x8x32xf32, #tpu.memory_space<vmem>>, vector<1x8x32xf32>
    %202 = vector.shape_cast %201 : vector<1x8x32xf32> to vector<8x32xf32>
    %203 = arith.addf %199, %202 : vector<8x32xf32>
    %204 = arith.negf %203 : vector<8x32xf32>
    %205 = math.exp %204 : vector<8x32xf32>
    %cst_81 = arith.constant 1.000000e+00 : f32
    %206 = vector.broadcast %cst_81 : f32 to vector<8x32xf32>
    %207 = arith.addf %206, %205 : vector<8x32xf32>
    %208 = arith.divf %206, %207 : vector<8x32xf32>
    %cst_82 = arith.constant dense<0.000000e+00> : vector<8x32xf32>
    %209 = tpu.matmul %198, %1, %cst_82 {dimension_numbers = #tpu.dot_dimension_numbers<[1], [0], [0], [1], [0, 0, 1, 1], [], []>} : vector<8x32xbf16>, vector<32x32xbf16>, vector<8x32xf32> -> vector<8x32xf32>
    %210 = arith.index_cast %c5_i32 : i32 to index
    %c0_83 = arith.constant 0 : index
    %c0_84 = arith.constant 0 : index
    %211 = vector.load %arg3[%210, %c0_83, %c0_84] : memref<8x8x32xf32, #tpu.memory_space<vmem>>, vector<1x8x32xf32>
    %212 = vector.shape_cast %211 : vector<1x8x32xf32> to vector<8x32xf32>
    %213 = arith.addf %209, %212 : vector<8x32xf32>
    %214 = arith.negf %213 : vector<8x32xf32>
    %215 = math.exp %214 : vector<8x32xf32>
    %cst_85 = arith.constant 1.000000e+00 : f32
    %216 = vector.broadcast %cst_85 : f32 to vector<8x32xf32>
    %217 = arith.addf %216, %215 : vector<8x32xf32>
    %218 = arith.divf %216, %217 : vector<8x32xf32>
    %219 = arith.mulf %218, %197 : vector<8x32xf32>
    %220 = arith.truncf %219 : vector<8x32xf32> to vector<8x32xbf16>
    %cst_86 = arith.constant dense<0.000000e+00> : vector<8x32xf32>
    %221 = tpu.matmul %220, %2, %cst_86 {dimension_numbers = #tpu.dot_dimension_numbers<[1], [0], [0], [1], [0, 0, 1, 1], [], []>} : vector<8x32xbf16>, vector<32x32xbf16>, vector<8x32xf32> -> vector<8x32xf32>
    %222 = arith.index_cast %c5_i32 : i32 to index
    %c0_87 = arith.constant 0 : index
    %c0_88 = arith.constant 0 : index
    %223 = vector.load %arg4[%222, %c0_87, %c0_88] : memref<8x8x32xf32, #tpu.memory_space<vmem>>, vector<1x8x32xf32>
    %224 = vector.shape_cast %223 : vector<1x8x32xf32> to vector<8x32xf32>
    %225 = arith.addf %221, %224 : vector<8x32xf32>
    %226 = math.tanh %225 : vector<8x32xf32>
    %cst_89 = arith.constant 1.000000e+00 : f32
    %227 = vector.broadcast %cst_89 : f32 to vector<8x32xf32>
    %228 = arith.subf %227, %208 : vector<8x32xf32>
    %229 = arith.mulf %228, %226 : vector<8x32xf32>
    %230 = arith.mulf %208, %197 : vector<8x32xf32>
    %231 = arith.addf %229, %230 : vector<8x32xf32>
    %c6_i32 = arith.constant 6 : i32
    %232 = arith.index_cast %c6_i32 : i32 to index
    %c0_90 = arith.constant 0 : index
    %c0_91 = arith.constant 0 : index
    %233 = vector.load %arg1[%232, %c0_90, %c0_91] : memref<8x8x32xf32, #tpu.memory_space<vmem>>, vector<1x8x32xf32>
    %234 = vector.shape_cast %233 : vector<1x8x32xf32> to vector<8x32xf32>
    %235 = arith.mulf %234, %231 : vector<8x32xf32>
    %236 = arith.truncf %235 : vector<8x32xf32> to vector<8x32xbf16>
    %cst_92 = arith.constant dense<0.000000e+00> : vector<8x32xf32>
    %237 = tpu.matmul %236, %0, %cst_92 {dimension_numbers = #tpu.dot_dimension_numbers<[1], [0], [0], [1], [0, 0, 1, 1], [], []>} : vector<8x32xbf16>, vector<32x32xbf16>, vector<8x32xf32> -> vector<8x32xf32>
    %238 = arith.index_cast %c6_i32 : i32 to index
    %c0_93 = arith.constant 0 : index
    %c0_94 = arith.constant 0 : index
    %239 = vector.load %arg2[%238, %c0_93, %c0_94] : memref<8x8x32xf32, #tpu.memory_space<vmem>>, vector<1x8x32xf32>
    %240 = vector.shape_cast %239 : vector<1x8x32xf32> to vector<8x32xf32>
    %241 = arith.addf %237, %240 : vector<8x32xf32>
    %242 = arith.negf %241 : vector<8x32xf32>
    %243 = math.exp %242 : vector<8x32xf32>
    %cst_95 = arith.constant 1.000000e+00 : f32
    %244 = vector.broadcast %cst_95 : f32 to vector<8x32xf32>
    %245 = arith.addf %244, %243 : vector<8x32xf32>
    %246 = arith.divf %244, %245 : vector<8x32xf32>
    %cst_96 = arith.constant dense<0.000000e+00> : vector<8x32xf32>
    %247 = tpu.matmul %236, %1, %cst_96 {dimension_numbers = #tpu.dot_dimension_numbers<[1], [0], [0], [1], [0, 0, 1, 1], [], []>} : vector<8x32xbf16>, vector<32x32xbf16>, vector<8x32xf32> -> vector<8x32xf32>
    %248 = arith.index_cast %c6_i32 : i32 to index
    %c0_97 = arith.constant 0 : index
    %c0_98 = arith.constant 0 : index
    %249 = vector.load %arg3[%248, %c0_97, %c0_98] : memref<8x8x32xf32, #tpu.memory_space<vmem>>, vector<1x8x32xf32>
    %250 = vector.shape_cast %249 : vector<1x8x32xf32> to vector<8x32xf32>
    %251 = arith.addf %247, %250 : vector<8x32xf32>
    %252 = arith.negf %251 : vector<8x32xf32>
    %253 = math.exp %252 : vector<8x32xf32>
    %cst_99 = arith.constant 1.000000e+00 : f32
    %254 = vector.broadcast %cst_99 : f32 to vector<8x32xf32>
    %255 = arith.addf %254, %253 : vector<8x32xf32>
    %256 = arith.divf %254, %255 : vector<8x32xf32>
    %257 = arith.mulf %256, %235 : vector<8x32xf32>
    %258 = arith.truncf %257 : vector<8x32xf32> to vector<8x32xbf16>
    %cst_100 = arith.constant dense<0.000000e+00> : vector<8x32xf32>
    %259 = tpu.matmul %258, %2, %cst_100 {dimension_numbers = #tpu.dot_dimension_numbers<[1], [0], [0], [1], [0, 0, 1, 1], [], []>} : vector<8x32xbf16>, vector<32x32xbf16>, vector<8x32xf32> -> vector<8x32xf32>
    %260 = arith.index_cast %c6_i32 : i32 to index
    %c0_101 = arith.constant 0 : index
    %c0_102 = arith.constant 0 : index
    %261 = vector.load %arg4[%260, %c0_101, %c0_102] : memref<8x8x32xf32, #tpu.memory_space<vmem>>, vector<1x8x32xf32>
    %262 = vector.shape_cast %261 : vector<1x8x32xf32> to vector<8x32xf32>
    %263 = arith.addf %259, %262 : vector<8x32xf32>
    %264 = math.tanh %263 : vector<8x32xf32>
    %cst_103 = arith.constant 1.000000e+00 : f32
    %265 = vector.broadcast %cst_103 : f32 to vector<8x32xf32>
    %266 = arith.subf %265, %246 : vector<8x32xf32>
    %267 = arith.mulf %266, %264 : vector<8x32xf32>
    %268 = arith.mulf %246, %235 : vector<8x32xf32>
    %269 = arith.addf %267, %268 : vector<8x32xf32>
    %c7_i32 = arith.constant 7 : i32
    %270 = arith.index_cast %c7_i32 : i32 to index
    %c0_104 = arith.constant 0 : index
    %c0_105 = arith.constant 0 : index
    %271 = vector.load %arg1[%270, %c0_104, %c0_105] : memref<8x8x32xf32, #tpu.memory_space<vmem>>, vector<1x8x32xf32>
    %272 = vector.shape_cast %271 : vector<1x8x32xf32> to vector<8x32xf32>
    %273 = arith.mulf %272, %269 : vector<8x32xf32>
    %274 = arith.truncf %273 : vector<8x32xf32> to vector<8x32xbf16>
    %cst_106 = arith.constant dense<0.000000e+00> : vector<8x32xf32>
    %275 = tpu.matmul %274, %0, %cst_106 {dimension_numbers = #tpu.dot_dimension_numbers<[1], [0], [0], [1], [0, 0, 1, 1], [], []>} : vector<8x32xbf16>, vector<32x32xbf16>, vector<8x32xf32> -> vector<8x32xf32>
    %276 = arith.index_cast %c7_i32 : i32 to index
    %c0_107 = arith.constant 0 : index
    %c0_108 = arith.constant 0 : index
    %277 = vector.load %arg2[%276, %c0_107, %c0_108] : memref<8x8x32xf32, #tpu.memory_space<vmem>>, vector<1x8x32xf32>
    %278 = vector.shape_cast %277 : vector<1x8x32xf32> to vector<8x32xf32>
    %279 = arith.addf %275, %278 : vector<8x32xf32>
    %280 = arith.negf %279 : vector<8x32xf32>
    %281 = math.exp %280 : vector<8x32xf32>
    %cst_109 = arith.constant 1.000000e+00 : f32
    %282 = vector.broadcast %cst_109 : f32 to vector<8x32xf32>
    %283 = arith.addf %282, %281 : vector<8x32xf32>
    %284 = arith.divf %282, %283 : vector<8x32xf32>
    %cst_110 = arith.constant dense<0.000000e+00> : vector<8x32xf32>
    %285 = tpu.matmul %274, %1, %cst_110 {dimension_numbers = #tpu.dot_dimension_numbers<[1], [0], [0], [1], [0, 0, 1, 1], [], []>} : vector<8x32xbf16>, vector<32x32xbf16>, vector<8x32xf32> -> vector<8x32xf32>
    %286 = arith.index_cast %c7_i32 : i32 to index
    %c0_111 = arith.constant 0 : index
    %c0_112 = arith.constant 0 : index
    %287 = vector.load %arg3[%286, %c0_111, %c0_112] : memref<8x8x32xf32, #tpu.memory_space<vmem>>, vector<1x8x32xf32>
    %288 = vector.shape_cast %287 : vector<1x8x32xf32> to vector<8x32xf32>
    %289 = arith.addf %285, %288 : vector<8x32xf32>
    %290 = arith.negf %289 : vector<8x32xf32>
    %291 = math.exp %290 : vector<8x32xf32>
    %cst_113 = arith.constant 1.000000e+00 : f32
    %292 = vector.broadcast %cst_113 : f32 to vector<8x32xf32>
    %293 = arith.addf %292, %291 : vector<8x32xf32>
    %294 = arith.divf %292, %293 : vector<8x32xf32>
    %295 = arith.mulf %294, %273 : vector<8x32xf32>
    %296 = arith.truncf %295 : vector<8x32xf32> to vector<8x32xbf16>
    %cst_114 = arith.constant dense<0.000000e+00> : vector<8x32xf32>
    %297 = tpu.matmul %296, %2, %cst_114 {dimension_numbers = #tpu.dot_dimension_numbers<[1], [0], [0], [1], [0, 0, 1, 1], [], []>} : vector<8x32xbf16>, vector<32x32xbf16>, vector<8x32xf32> -> vector<8x32xf32>
    %298 = arith.index_cast %c7_i32 : i32 to index
    %c0_115 = arith.constant 0 : index
    %c0_116 = arith.constant 0 : index
    %299 = vector.load %arg4[%298, %c0_115, %c0_116] : memref<8x8x32xf32, #tpu.memory_space<vmem>>, vector<1x8x32xf32>
    %300 = vector.shape_cast %299 : vector<1x8x32xf32> to vector<8x32xf32>
    %301 = arith.addf %297, %300 : vector<8x32xf32>
    %302 = math.tanh %301 : vector<8x32xf32>
    %cst_117 = arith.constant 1.000000e+00 : f32
    %303 = vector.broadcast %cst_117 : f32 to vector<8x32xf32>
    %304 = arith.subf %303, %284 : vector<8x32xf32>
    %305 = arith.mulf %304, %302 : vector<8x32xf32>
    %306 = arith.mulf %284, %273 : vector<8x32xf32>
    %307 = arith.addf %305, %306 : vector<8x32xf32>
    %c8_i32 = arith.constant 8 : i32
    %c0_118 = arith.constant 0 : index
    %c0_119 = arith.constant 0 : index
    %308 = vector.load %arg12[%c0_118, %c0_119] : memref<8x32xf32, #tpu.memory_space<vmem>>, vector<8x32xf32>
    tpu.vector_store %arg12[%c0_118, %c0_119], %307 {strides = array<i32>} : memref<8x32xf32, #tpu.memory_space<vmem>>, vector<8x32xf32>,
    %309 = arith.truncf %307 : vector<8x32xf32> to vector<8x32xbf16>
    %c0_120 = arith.constant 0 : index
    %c0_121 = arith.constant 0 : index
    %310 = vector.load %arg9[%c0_120, %c0_121] : memref<32x2xbf16, #tpu.memory_space<vmem>>, vector<32x2xbf16>
    %cst_122 = arith.constant dense<0.000000e+00> : vector<8x2xf32>
    %311 = tpu.matmul %309, %310, %cst_122 {dimension_numbers = #tpu.dot_dimension_numbers<[1], [0], [0], [1], [0, 0, 1, 1], [], []>} : vector<8x32xbf16>, vector<32x2xbf16>, vector<8x2xf32> -> vector<8x2xf32>
    %c0_123 = arith.constant 0 : index
    %c0_124 = arith.constant 0 : index
    %312 = vector.load %arg10[%c0_123, %c0_124] : memref<1x2xf32, #tpu.memory_space<vmem>>, vector<1x2xf32>
    %313 = vector.broadcast %312 : vector<1x2xf32> to vector<8x2xf32>
    %314 = arith.addf %311, %313 : vector<8x2xf32>
    %cst_125 = arith.constant dense<0xFF800000> : vector<8xf32>
    %315 = vector.multi_reduction <maximumf>, %314, %cst_125 [1] : vector<8x2xf32> to vector<8xf32>
    %316 = vector.shape_cast %315 : vector<8xf32> to vector<8x1xf32>
    %317 = vector.broadcast %316 : vector<8x1xf32> to vector<8x2xf32>
    %318 = arith.subf %314, %317 : vector<8x2xf32>
    %319 = math.exp %318 : vector<8x2xf32>
    %cst_126 = arith.constant dense<0.000000e+00> : vector<8xf32>
    %320 = vector.multi_reduction <add>, %319, %cst_126 [1] : vector<8x2xf32> to vector<8xf32>
    %321 = vector.shape_cast %320 : vector<8xf32> to vector<8x1xf32>
    %322 = vector.broadcast %321 : vector<8x1xf32> to vector<8x2xf32>
    %323 = arith.divf %319, %322 : vector<8x2xf32>
    %c0_127 = arith.constant 0 : index
    %c0_128 = arith.constant 0 : index
    %324 = vector.load %arg11[%c0_127, %c0_128] : memref<8x2xf32, #tpu.memory_space<vmem>>, vector<8x2xf32>
    tpu.vector_store %arg11[%c0_127, %c0_128], %323 {strides = array<i32>} : memref<8x2xf32, #tpu.memory_space<vmem>>, vector<8x2xf32>,
    return
  }
  func.func @transform_0(%arg0: i32) -> (i32, i32, i32) {
    %c0_i32 = arith.constant 0 : i32
    %c0_i32_0 = arith.constant 0 : i32
    %c0_i32_1 = arith.constant 0 : i32
    %c0_i32_2 = arith.constant 0 : i32
    return %c0_i32, %c0_i32_0, %c0_i32_1 : i32, i32, i32
  }
  func.func @transform_1(%arg0: i32) -> (i32, i32, i32) {
    %c0_i32 = arith.constant 0 : i32
    %c0_i32_0 = arith.constant 0 : i32
    %c0_i32_1 = arith.constant 0 : i32
    %c0_i32_2 = arith.constant 0 : i32
    return %c0_i32, %c0_i32_0, %c0_i32_1 : i32, i32, i32
  }
  func.func @transform_2(%arg0: i32) -> (i32, i32, i32) {
    %c0_i32 = arith.constant 0 : i32
    %c0_i32_0 = arith.constant 0 : i32
    %c0_i32_1 = arith.constant 0 : i32
    %c0_i32_2 = arith.constant 0 : i32
    return %c0_i32, %c0_i32_0, %c0_i32_1 : i32, i32, i32
  }
  func.func @transform_3(%arg0: i32) -> (i32, i32, i32) {
    %c0_i32 = arith.constant 0 : i32
    %c0_i32_0 = arith.constant 0 : i32
    %c0_i32_1 = arith.constant 0 : i32
    %c0_i32_2 = arith.constant 0 : i32
    return %c0_i32, %c0_i32_0, %c0_i32_1 : i32, i32, i32
  }
  func.func @transform_4(%arg0: i32) -> (i32, i32) {
    %c0_i32 = arith.constant 0 : i32
    %c0_i32_0 = arith.constant 0 : i32
    %c0_i32_1 = arith.constant 0 : i32
    return %c0_i32, %c0_i32_0 : i32, i32
  }
  func.func @transform_5(%arg0: i32) -> (i32, i32) {
    %c0_i32 = arith.constant 0 : i32
    %c0_i32_0 = arith.constant 0 : i32
    %c0_i32_1 = arith.constant 0 : i32
    return %c0_i32, %c0_i32_0 : i32, i32
  }
  func.func @transform_6(%arg0: i32) -> (i32, i32) {
    %c0_i32 = arith.constant 0 : i32
    %c0_i32_0 = arith.constant 0 : i32
    %c0_i32_1 = arith.constant 0 : i32
    return %c0_i32, %c0_i32_0 : i32, i32
  }
  func.func @transform_7(%arg0: i32) -> (i32, i32) {
    %c0_i32 = arith.constant 0 : i32
    %c0_i32_0 = arith.constant 0 : i32
    %c0_i32_1 = arith.constant 0 : i32
    return %c0_i32, %c0_i32_0 : i32, i32
  }
  func.func @transform_8(%arg0: i32) -> (i32, i32) {
    %c0_i32 = arith.constant 0 : i32
    %c0_i32_0 = arith.constant 0 : i32
    %c0_i32_1 = arith.constant 0 : i32
    return %c0_i32, %c0_i32_0 : i32, i32
  }
  func.func @transform_9(%arg0: i32) -> (i32, i32) {
    %c0_i32 = arith.constant 0 : i32
    %c0_i32_0 = arith.constant 0 : i32
    %c0_i32_1 = arith.constant 0 : i32
    return %c0_i32, %c0_i32_0 : i32, i32
  }
  func.func @transform_10(%arg0: i32) -> (i32, i32) {
    %c0_i32 = arith.constant 0 : i32
    %c0_i32_0 = arith.constant 0 : i32
    %c0_i32_1 = arith.constant 0 : i32
    return %c0_i32, %c0_i32_0 : i32, i32
  }
  func.func @transform_11(%arg0: i32) -> (i32, i32) {
    %c0_i32 = arith.constant 0 : i32
    %c0_i32_0 = arith.constant 0 : i32
    %c0_i32_1 = arith.constant 0 : i32
    return %c0_i32, %c0_i32_0 : i32, i32
  }
}

</mosaic_0001>

<llo_original>
// kernel: tpu_custom_call.1
$region0: #{tpu_custom_call.1}
  #allocation0 [shape = 'u32[]', space=smem, size = 0x4, offset = 0x4, fixed_abs, tag = 'smem constant byte address 0x4 - core index']
  #allocation1 [shape = 'u32[144,128]{1,0:T(1,128)}', space=vmem, size = 0x12000, scoped, tag = 'internal scratch']
  %s0 = inlined_call_operand.hbm [shape: f32[8,8,32], index: 0, kind: input, shape index: {}]
  %s1 = inlined_call_operand.hbm [shape: f32[8,8,32], index: 1, kind: input, shape index: {}]
  %s2 = inlined_call_operand.hbm [shape: f32[8,8,32], index: 2, kind: input, shape index: {}]
  %s3 = inlined_call_operand.hbm [shape: f32[8,8,32], index: 3, kind: input, shape index: {}]
  %s4 = inlined_call_operand.hbm [shape: f32[8,32], index: 4, kind: input, shape index: {}]
  %s5 = inlined_call_operand.vmem [shape: bf16[32,32], index: 5, kind: input, shape index: {}]
  %s6 = inlined_call_operand.vmem [shape: bf16[32,32], index: 6, kind: input, shape index: {}]
  %s7 = inlined_call_operand.hbm [shape: bf16[32,32], index: 7, kind: input, shape index: {}]
  %s8 = inlined_call_operand.vmem [shape: bf16[32,2], index: 8, kind: input, shape index: {}]
  %s9 = inlined_call_operand.vmem [shape: f32[1,2], index: 9, kind: input, shape index: {}]
  %s10 = inlined_call_operand.vmem [shape: f32[8,2], index: 10, kind: output, shape index: {0}]
  %s11 = inlined_call_operand.hbm [shape: f32[8,32], index: 11, kind: output, shape index: {1}]
  %12 = xla_tuple %s10, %s11
  %s13 = sld [smem:[#allocation0]]
  $region82: #{tpu_custom_call.1} parent=0
    _
  %s15 = ssub.s32 1, %s13
  %s16 = scalar_select 0, %s15, %s13
  $region1: #{tpu_custom_call.1} parent=0
    #allocation2 [shape = 'u8[32768]{0}', space=vmem, size = 0x8000, scoped, tag = 'input window, operand 0, single buffered']
    #allocation3 [shape = 's32[1]{0}', space=sflag, size = 0x4, scoped, tag = 'scoped memory for tpu_custom_call.1']
    #allocation4 [shape = 's32[1]{0}', space=sflag, size = 0x4, scoped, tag = 'scoped memory for tpu_custom_call.1']
    #allocation5 [shape = 'u8[32768]{0}', space=vmem, size = 0x8000, scoped, tag = 'input window, operand 1, single buffered']
    #allocation6 [shape = 's32[1]{0}', space=sflag, size = 0x4, scoped, tag = 'scoped memory for tpu_custom_call.1']
    #allocation7 [shape = 'u8[32768]{0}', space=vmem, size = 0x8000, scoped, tag = 'input window, operand 2, single buffered']
    #allocation8 [shape = 'u8[32768]{0}', space=vmem, size = 0x8000, scoped, tag = 'input window, operand 3, single buffered']
    #allocation9 [shape = 's32[1]{0}', space=sflag, size = 0x4, scoped, tag = 'scoped memory for tpu_custom_call.1']
    #allocation10 [shape = 'u8[4096]{0}', space=vmem, size = 0x1000, scoped, tag = 'input window, operand 4, single buffered']
    #allocation11 [shape = 'u8[8192]{0}', space=vmem, size = 0x2000, scoped, tag = 'input window, operand 7, single buffered']
    #allocation12 [shape = 's32[1]{0}', space=sflag, size = 0x4, scoped, tag = 'scoped memory for tpu_custom_call.1']
    #allocation13 [shape = 'u8[4096]{0}', space=vmem, size = 0x1000, scoped, tag = 'output window, operand 1, single buffered']
    %17 = vsyncpa [#allocation3], 0
    %18 = vsyncpa [#allocation6], 0
    %19 = vsyncpa [#allocation9], 0
    %20 = vsyncpa [#allocation12], 0
    %21 = vsyncpa [#allocation4], 0
    // Predicated region
    $region2: #{tpu_custom_call.1} parent=1 // pred_check
      _
    $region3: #{tpu_custom_call.1} parent=1 // pred_check_branch
      %23 = sbr.rel (0) target = $region5
    $region4: #{tpu_custom_call.1} parent=1 // pred_region
      %s25 = ssub.s32 1024, 1024
      %26 = vsyncadd [#allocation3], %s25
      %s27 = sshll.u32 [#allocation2], 4
      %s28 = int_to_ptr.vmem [resolvable:$true] %s27
      %33 = dma.hbm_to_vmem [thread:$0]  %s0, 1024, %s28, [#allocation3], 128, 128, 8
    $region5: #{tpu_custom_call.1} parent=1 // pred_fallthru
      _
    // Predicated region
    $region6: #{tpu_custom_call.1} parent=1 // pred_check
      _
    $region7: #{tpu_custom_call.1} parent=1 // pred_check_branch
      %35 = sbr.rel (0) target = $region9
    $region8: #{tpu_custom_call.1} parent=1 // pred_region
      %s37 = ssub.s32 1024, 1024
      %38 = vsyncadd [#allocation6], %s37
      %s39 = sshll.u32 [#allocation5], 4
      %s40 = int_to_ptr.vmem [resolvable:$true] %s39
      %45 = dma.hbm_to_vmem [thread:$0]  %s1, 1024, %s40, [#allocation6], 128, 128, 8
    $region9: #{tpu_custom_call.1} parent=1 // pred_fallthru
      _
    // Predicated region
    $region10: #{tpu_custom_call.1} parent=1 // pred_check
      _
    $region11: #{tpu_custom_call.1} parent=1 // pred_check_branch
      %47 = sbr.rel (0) target = $region13
    $region12: #{tpu_custom_call.1} parent=1 // pred_region
      %s49 = ssub.s32 1024, 1024
      %50 = vsyncadd [#allocation6], %s49
      %s51 = sshll.u32 [#allocation7], 4
      %s52 = int_to_ptr.vmem [resolvable:$true] %s51
      %57 = dma.hbm_to_vmem [thread:$0]  %s2, 1024, %s52, [#allocation6], 128, 128, 8
    $region13: #{tpu_custom_call.1} parent=1 // pred_fallthru
      _
    // Predicated region
    $region14: #{tpu_custom_call.1} parent=1 // pred_check
      _
    $region15: #{tpu_custom_call.1} parent=1 // pred_check_branch
      %59 = sbr.rel (0) target = $region17
    $region16: #{tpu_custom_call.1} parent=1 // pred_region
      %s61 = ssub.s32 1024, 1024
      %62 = vsyncadd [#allocation9], %s61
      %s63 = sshll.u32 [#allocation8], 4
      %s64 = int_to_ptr.vmem [resolvable:$true] %s63
      %69 = dma.hbm_to_vmem [thread:$0]  %s3, 1024, %s64, [#allocation9], 128, 128, 8
    $region17: #{tpu_custom_call.1} parent=1 // pred_fallthru
      _
    // Predicated region
    $region18: #{tpu_custom_call.1} parent=1 // pred_check
      _
    $region19: #{tpu_custom_call.1} parent=1 // pred_check_branch
      %71 = sbr.rel (0) target = $region21
    $region20: #{tpu_custom_call.1} parent=1 // pred_region
      %s73 = ssub.s32 128, 128
      %74 = vsyncadd [#allocation9], %s73
      %s76 = sshll.u32 [#allocation10], 4
      %s77 = int_to_ptr.vmem [resolvable:$true] %s76
      %79 = dma.hbm_to_vmem [thread:$0]  %s4, 128, %s77, [#allocation9]
    $region21: #{tpu_custom_call.1} parent=1 // pred_fallthru
      _
    // Predicated region
    $region22: #{tpu_custom_call.1} parent=1 // pred_check
      _
    $region23: #{tpu_custom_call.1} parent=1 // pred_check_branch
      %81 = sbr.rel (0) target = $region25
    $region24: #{tpu_custom_call.1} parent=1 // pred_region
      _
    $region25: #{tpu_custom_call.1} parent=1 // pred_fallthru
      _
    // Predicated region
    $region26: #{tpu_custom_call.1} parent=1 // pred_check
      _
    $region27: #{tpu_custom_call.1} parent=1 // pred_check_branch
      %83 = sbr.rel (0) target = $region29
    $region28: #{tpu_custom_call.1} parent=1 // pred_region
      _
    $region29: #{tpu_custom_call.1} parent=1 // pred_fallthru
      _
    // Predicated region
    $region30: #{tpu_custom_call.1} parent=1 // pred_check
      _
    $region31: #{tpu_custom_call.1} parent=1 // pred_check_branch
      %85 = sbr.rel (0) target = $region33
    $region32: #{tpu_custom_call.1} parent=1 // pred_region
      %s87 = ssub.s32 256, 256
      %88 = vsyncadd [#allocation12], %s87
      %s89 = sshll.u32 [#allocation11], 4
      %s90 = int_to_ptr.vmem [resolvable:$true] %s89
      %95 = dma.hbm_to_vmem [thread:$0]  %s7, 256, %s90, [#allocation12], 64, 64, 4
    $region33: #{tpu_custom_call.1} parent=1 // pred_fallthru
      _
    // Predicated region
    $region34: #{tpu_custom_call.1} parent=1 // pred_check
      _
    $region35: #{tpu_custom_call.1} parent=1 // pred_check_branch
      %97 = sbr.rel (0) target = $region37
    $region36: #{tpu_custom_call.1} parent=1 // pred_region
      _
    $region37: #{tpu_custom_call.1} parent=1 // pred_fallthru
      _
    // Predicated region
    $region38: #{tpu_custom_call.1} parent=1 // pred_check
      _
    $region39: #{tpu_custom_call.1} parent=1 // pred_check_branch
      %99 = sbr.rel (0) target = $region41
    $region40: #{tpu_custom_call.1} parent=1 // pred_region
      _
    $region41: #{tpu_custom_call.1} parent=1 // pred_fallthru
      _
    // Predicated region
    $region42: #{tpu_custom_call.1} parent=1 // pred_check
      _
    $region43: #{tpu_custom_call.1} parent=1 // pred_check_branch
      %101 = sbr.rel (0) target = $region45
    $region44: #{tpu_custom_call.1} parent=1 // pred_region
      %102 = dma.done [#allocation3], 1024
    $region45: #{tpu_custom_call.1} parent=1 // pred_fallthru
      _
    // Predicated region
    $region46: #{tpu_custom_call.1} parent=1 // pred_check
      _
    $region47: #{tpu_custom_call.1} parent=1 // pred_check_branch
      %104 = sbr.rel (0) target = $region49
    $region48: #{tpu_custom_call.1} parent=1 // pred_region
      %105 = dma.done [#allocation6], 1024
    $region49: #{tpu_custom_call.1} parent=1 // pred_fallthru
      _
    // Predicated region
    $region50: #{tpu_custom_call.1} parent=1 // pred_check
      _
    $region51: #{tpu_custom_call.1} parent=1 // pred_check_branch
      %107 = sbr.rel (0) target = $region53
    $region52: #{tpu_custom_call.1} parent=1 // pred_region
      %108 = dma.done [#allocation6], 1024
    $region53: #{tpu_custom_call.1} parent=1 // pred_fallthru
      _
    // Predicated region
    $region54: #{tpu_custom_call.1} parent=1 // pred_check
      _
    $region55: #{tpu_custom_call.1} parent=1 // pred_check_branch
      %110 = sbr.rel (0) target = $region57
    $region56: #{tpu_custom_call.1} parent=1 // pred_region
      %111 = dma.done [#allocation9], 1024
    $region57: #{tpu_custom_call.1} parent=1 // pred_fallthru
      _
    // Predicated region
    $region58: #{tpu_custom_call.1} parent=1 // pred_check
      _
    $region59: #{tpu_custom_call.1} parent=1 // pred_check_branch
      %113 = sbr.rel (0) target = $region61
    $region60: #{tpu_custom_call.1} parent=1 // pred_region
      %114 = dma.done [#allocation9], 128
    $region61: #{tpu_custom_call.1} parent=1 // pred_fallthru
      _
    // Predicated region
    $region62: #{tpu_custom_call.1} parent=1 // pred_check
      _
    $region63: #{tpu_custom_call.1} parent=1 // pred_check_branch
      %116 = sbr.rel (0) target = $region65
    $region64: #{tpu_custom_call.1} parent=1 // pred_region
      %117 = dma.done [#allocation12], 256
    $region65: #{tpu_custom_call.1} parent=1 // pred_fallthru
      _
    %v119 = vld [vmem:[%s5] sm:$0xf]
    %v120 = vld [vmem:[%s5 + $0x4] sm:$0xf]
    %v121 = vld [vmem:[%s5 + $0x8] sm:$0xf]
    %v122 = vld [vmem:[%s5 + $0xc] sm:$0xf]
    %v123 = vld [vmem:[%s6] sm:$0xf]
    %v124 = vld [vmem:[%s6 + $0x4] sm:$0xf]
    %v125 = vld [vmem:[%s6 + $0x8] sm:$0xf]
    %v126 = vld [vmem:[%s6 + $0xc] sm:$0xf]
    %v127 = vld [vmem:[#allocation11] sm:$0xf]
    %v128 = vld [vmem:[#allocation11 + $0x4] sm:$0xf]
    %v129 = vld [vmem:[#allocation11 + $0x8] sm:$0xf]
    %v130 = vld [vmem:[#allocation11 + $0xc] sm:$0xf]
    %v131 = vld [vmem:[#allocation10] sm:$0xff]
    %v132 = vld [vmem:[#allocation2] sm:$0xff]
    %v133 = vmul.f32 %v132, %v131
    %v134 = vpack.c.bf16 %v133, %v133
    %v135 = vld [vmem:[#allocation5] sm:$0xff]
    %v140 = vunpack.c.l.b16 %v119
    %v141 = vunpack.c.l.b16 %v120
    %v142 = vunpack.c.l.b16 %v121
    %v143 = vunpack.c.l.b16 %v122
    %v144 = vpack.c.b16 %v141, %v140
    %v145 = vpack.c.b16 %v143, %v142
    %vm148 = vcmask 261120
    %v150 = vsel %vm148, %v134, 0
    %152 = vmatprep.subr.bf16.mxu0 0
    %153 = vmatpush1.bf16.msra.mxu0 %v144
    %154 = vmatprep.subr.bf16.mxu0 0
    %155 = vmatpush1.bf16.msra.mxu0 %v145
    %156 = vmatprep.subr.bf16.mxu0 0
    %157 = vmatpush1.bf16.msra.mxu0 0
    %158 = vmatprep.subr.bf16.mxu0 0
    %159 = vmatpush1.bf16.msra.mxu0 0
    %160 = vmatprep.subr.bf16.mxu0 0
    %161 = vmatpush1.bf16.msra.mxu0 0
    %162 = vmatprep.subr.bf16.mxu0 0
    %163 = vmatpush1.bf16.msra.mxu0 0
    %164 = vmatprep.subr.bf16.mxu0 0
    %165 = vmatpush1.bf16.msra.mxu0 0
    %166 = vmatprep.subr.bf16.mxu0 0
    %167 = vmatpush1.bf16.msra.mxu0 0
    %168 = vmatprep.subr.bf16.mxu0 0
    %169 = vmatpush1.bf16.msra.mxu0 0
    %170 = vmatprep.subr.bf16.mxu0 0
    %171 = vmatpush1.bf16.msra.mxu0 0
    %172 = vmatprep.subr.bf16.mxu0 0
    %173 = vmatpush1.bf16.msra.mxu0 0
    %174 = vmatprep.subr.bf16.mxu0 0
    %175 = vmatpush1.bf16.msra.mxu0 0
    %176 = vmatprep.subr.bf16.mxu0 0
    %177 = vmatpush1.bf16.msra.mxu0 0
    %178 = vmatprep.subr.bf16.mxu0 0
    %179 = vmatpush1.bf16.msra.mxu0 0
    %180 = vmatprep.subr.bf16.mxu0 0
    %181 = vmatpush1.bf16.msra.mxu0 0
    %182 = vmatprep.subr.bf16.mxu0 0
    %183 = vmatpush1.bf16.msra.mxu0 0
    %184 = vmatprep.mubr.bf16.mxu0 0
    %185 = vmatmul.mubr.bf16.gmra.mrb[0].mxu0 %v150
    %v186 = vpop.f32.mrb[0].mxu0
    %v187 = vadd.f32 %v135, %v186
    %v188 = vpop.f32.mrb[0].mxu0
    %v189 = vpop.f32.mrb[0].mxu0
    %v190 = vpop.f32.mrb[0].mxu0
    %191 = vdwg.mxu0
    %v192 = vxor.u32 %v187, 2147483648
    %v193 = vmul.f32 %v192, 1.442695
    %v194 = vpow.pop %v193
    %v195 = vadd.f32 %v194, 1.0
    %v196 = vrcp.pop %v195
    %v197 = vmul.f32 1.0, %v196
    %v198 = vld [vmem:[#allocation7] sm:$0xff]
    %v203 = vunpack.c.l.b16 %v123
    %v204 = vunpack.c.l.b16 %v124
    %v205 = vunpack.c.l.b16 %v125
    %v206 = vunpack.c.l.b16 %v126
    %v207 = vpack.c.b16 %v204, %v203
    %v208 = vpack.c.b16 %v206, %v205
    %211 = vmatprep.subr.bf16.mxu0 0
    %212 = vmatpush1.bf16.msra.mxu0 %v207
    %213 = vmatprep.subr.bf16.mxu0 0
    %214 = vmatpush1.bf16.msra.mxu0 %v208
    %215 = vmatprep.subr.bf16.mxu0 0
    %216 = vmatpush1.bf16.msra.mxu0 0
    %217 = vmatprep.subr.bf16.mxu0 0
    %218 = vmatpush1.bf16.msra.mxu0 0
    %219 = vmatprep.subr.bf16.mxu0 0
    %220 = vmatpush1.bf16.msra.mxu0 0
    %221 = vmatprep.subr.bf16.mxu0 0
    %222 = vmatpush1.bf16.msra.mxu0 0
    %223 = vmatprep.subr.bf16.mxu0 0
    %224 = vmatpush1.bf16.msra.mxu0 0
    %225 = vmatprep.subr.bf16.mxu0 0
    %226 = vmatpush1.bf16.msra.mxu0 0
    %227 = vmatprep.subr.bf16.mxu0 0
    %228 = vmatpush1.bf16.msra.mxu0 0
    %229 = vmatprep.subr.bf16.mxu0 0
    %230 = vmatpush1.bf16.msra.mxu0 0
    %231 = vmatprep.subr.bf16.mxu0 0
    %232 = vmatpush1.bf16.msra.mxu0 0
    %233 = vmatprep.subr.bf16.mxu0 0
    %234 = vmatpush1.bf16.msra.mxu0 0
    %235 = vmatprep.subr.bf16.mxu0 0
    %236 = vmatpush1.bf16.msra.mxu0 0
    %237 = vmatprep.subr.bf16.mxu0 0
    %238 = vmatpush1.bf16.msra.mxu0 0
    %239 = vmatprep.subr.bf16.mxu0 0
    %240 = vmatpush1.bf16.msra.mxu0 0
    %241 = vmatprep.subr.bf16.mxu0 0
    %242 = vmatpush1.bf16.msra.mxu0 0
    %243 = vmatprep.mubr.bf16.mxu0 0
    %244 = vmatmul.mubr.bf16.gmra.mrb[0].mxu0 %v150
    %v245 = vpop.f32.mrb[0].mxu0
    %v246 = vadd.f32 %v198, %v245
    %v247 = vpop.f32.mrb[0].mxu0
    %v248 = vpop.f32.mrb[0].mxu0
    %v249 = vpop.f32.mrb[0].mxu0
    %250 = vdwg.mxu0
    %v251 = vxor.u32 %v246, 2147483648
    %v252 = vmul.f32 %v251, 1.442695
    %v253 = vpow.pop %v252
    %v254 = vadd.f32 %v253, 1.0
    %v255 = vrcp.pop %v254
    %v256 = vmul.f32 1.0, %v255
    %v257 = vmul.f32 %v256, %v133
    %v258 = vpack.c.bf16 %v257, %v257
    %v259 = vld [vmem:[#allocation8] sm:$0xff]
    %v264 = vunpack.c.l.b16 %v127
    %v265 = vunpack.c.l.b16 %v128
    %v266 = vunpack.c.l.b16 %v129
    %v267 = vunpack.c.l.b16 %v130
    %v268 = vpack.c.b16 %v265, %v264
    %v269 = vpack.c.b16 %v267, %v266
    %v273 = vsel %vm148, %v258, 0
    %275 = vmatprep.subr.bf16.mxu0 0
    %276 = vmatpush1.bf16.msra.mxu0 %v268
    %277 = vmatprep.subr.bf16.mxu0 0
    %278 = vmatpush1.bf16.msra.mxu0 %v269
    %279 = vmatprep.subr.bf16.mxu0 0
    %280 = vmatpush1.bf16.msra.mxu0 0
    %281 = vmatprep.subr.bf16.mxu0 0
    %282 = vmatpush1.bf16.msra.mxu0 0
    %283 = vmatprep.subr.bf16.mxu0 0
    %284 = vmatpush1.bf16.msra.mxu0 0
    %285 = vmatprep.subr.bf16.mxu0 0
    %286 = vmatpush1.bf16.msra.mxu0 0
    %287 = vmatprep.subr.bf16.mxu0 0
    %288 = vmatpush1.bf16.msra.mxu0 0
    %289 = vmatprep.subr.bf16.mxu0 0
    %290 = vmatpush1.bf16.msra.mxu0 0
    %291 = vmatprep.subr.bf16.mxu0 0
    %292 = vmatpush1.bf16.msra.mxu0 0
    %293 = vmatprep.subr.bf16.mxu0 0
    %294 = vmatpush1.bf16.msra.mxu0 0
    %295 = vmatprep.subr.bf16.mxu0 0
    %296 = vmatpush1.bf16.msra.mxu0 0
    %297 = vmatprep.subr.bf16.mxu0 0
    %298 = vmatpush1.bf16.msra.mxu0 0
    %299 = vmatprep.subr.bf16.mxu0 0
    %300 = vmatpush1.bf16.msra.mxu0 0
    %301 = vmatprep.subr.bf16.mxu0 0
    %302 = vmatpush1.bf16.msra.mxu0 0
    %303 = vmatprep.subr.bf16.mxu0 0
    %304 = vmatpush1.bf16.msra.mxu0 0
    %305 = vmatprep.subr.bf16.mxu0 0
    %306 = vmatpush1.bf16.msra.mxu0 0
    %307 = vmatprep.mubr.bf16.mxu0 0
    %308 = vmatmul.mubr.bf16.gmra.mrb[0].mxu0 %v273
    %v309 = vpop.f32.mrb[0].mxu0
    %v310 = vadd.f32 %v259, %v309
    %v311 = vpop.f32.mrb[0].mxu0
    %v312 = vpop.f32.mrb[0].mxu0
    %v313 = vpop.f32.mrb[0].mxu0
    %314 = vdwg.mxu0
    %v315 = vtanh.pop %v310
    %v316 = vsub.f32 1.0, %v197
    %v317 = vmul.f32 %v316, %v315
    %v318 = vmul.f32 %v197, %v133
    %v319 = vadd.f32 %v317, %v318
    %s320 = scalar_lea.vmem [#allocation2], 8
    %v321 = vld [vmem:[%s320] sm:$0xff]
    %v322 = vmul.f32 %v321, %v319
    %v323 = vpack.c.bf16 %v322, %v322
    %s324 = scalar_lea.vmem [#allocation5], 8
    %v325 = vld [vmem:[%s324] sm:$0xff]
    %v327 = vsel %vm148, %v323, 0
    %329 = vmatprep.subr.bf16.mxu0 0
    %330 = vmatpush1.bf16.msra.mxu0 %v144
    %331 = vmatprep.subr.bf16.mxu0 0
    %332 = vmatpush1.bf16.msra.mxu0 %v145
    %333 = vmatprep.subr.bf16.mxu0 0
    %334 = vmatpush1.bf16.msra.mxu0 0
    %335 = vmatprep.subr.bf16.mxu0 0
    %336 = vmatpush1.bf16.msra.mxu0 0
    %337 = vmatprep.subr.bf16.mxu0 0
    %338 = vmatpush1.bf16.msra.mxu0 0
    %339 = vmatprep.subr.bf16.mxu0 0
    %340 = vmatpush1.bf16.msra.mxu0 0
    %341 = vmatprep.subr.bf16.mxu0 0
    %342 = vmatpush1.bf16.msra.mxu0 0
    %343 = vmatprep.subr.bf16.mxu0 0
    %344 = vmatpush1.bf16.msra.mxu0 0
    %345 = vmatprep.subr.bf16.mxu0 0
    %346 = vmatpush1.bf16.msra.mxu0 0
    %347 = vmatprep.subr.bf16.mxu0 0
    %348 = vmatpush1.bf16.msra.mxu0 0
    %349 = vmatprep.subr.bf16.mxu0 0
    %350 = vmatpush1.bf16.msra.mxu0 0
    %351 = vmatprep.subr.bf16.mxu0 0
    %352 = vmatpush1.bf16.msra.mxu0 0
    %353 = vmatprep.subr.bf16.mxu0 0
    %354 = vmatpush1.bf16.msra.mxu0 0
    %355 = vmatprep.subr.bf16.mxu0 0
    %356 = vmatpush1.bf16.msra.mxu0 0
    %357 = vmatprep.subr.bf16.mxu0 0
    %358 = vmatpush1.bf16.msra.mxu0 0
    %359 = vmatprep.subr.bf16.mxu0 0
    %360 = vmatpush1.bf16.msra.mxu0 0
    %361 = vmatprep.mubr.bf16.mxu0 0
    %362 = vmatmul.mubr.bf16.gmra.mrb[0].mxu0 %v327
    %v363 = vpop.f32.mrb[0].mxu0
    %v364 = vadd.f32 %v325, %v363
    %v365 = vpop.f32.mrb[0].mxu0
    %v366 = vpop.f32.mrb[0].mxu0
    %v367 = vpop.f32.mrb[0].mxu0
    %368 = vdwg.mxu0
    %v369 = vxor.u32 %v364, 2147483648
    %v370 = vmul.f32 %v369, 1.442695
    %v371 = vpow.pop %v370
    %v372 = vadd.f32 %v371, 1.0
    %v373 = vrcp.pop %v372
    %v374 = vmul.f32 1.0, %v373
    %s375 = scalar_lea.vmem [#allocation7], 8
    %v376 = vld [vmem:[%s375] sm:$0xff]
    %377 = vmatprep.subr.bf16.mxu0 0
    %378 = vmatpush1.bf16.msra.mxu0 %v207
    %379 = vmatprep.subr.bf16.mxu0 0
    %380 = vmatpush1.bf16.msra.mxu0 %v208
    %381 = vmatprep.subr.bf16.mxu0 0
    %382 = vmatpush1.bf16.msra.mxu0 0
    %383 = vmatprep.subr.bf16.mxu0 0
    %384 = vmatpush1.bf16.msra.mxu0 0
    %385 = vmatprep.subr.bf16.mxu0 0
    %386 = vmatpush1.bf16.msra.mxu0 0
    %387 = vmatprep.subr.bf16.mxu0 0
    %388 = vmatpush1.bf16.msra.mxu0 0
    %389 = vmatprep.subr.bf16.mxu0 0
    %390 = vmatpush1.bf16.msra.mxu0 0
    %391 = vmatprep.subr.bf16.mxu0 0
    %392 = vmatpush1.bf16.msra.mxu0 0
    %393 = vmatprep.subr.bf16.mxu0 0
    %394 = vmatpush1.bf16.msra.mxu0 0
    %395 = vmatprep.subr.bf16.mxu0 0
    %396 = vmatpush1.bf16.msra.mxu0 0
    %397 = vmatprep.subr.bf16.mxu0 0
    %398 = vmatpush1.bf16.msra.mxu0 0
    %399 = vmatprep.subr.bf16.mxu0 0
    %400 = vmatpush1.bf16.msra.mxu0 0
    %401 = vmatprep.subr.bf16.mxu0 0
    %402 = vmatpush1.bf16.msra.mxu0 0
    %403 = vmatprep.subr.bf16.mxu0 0
    %404 = vmatpush1.bf16.msra.mxu0 0
    %405 = vmatprep.subr.bf16.mxu0 0
    %406 = vmatpush1.bf16.msra.mxu0 0
    %407 = vmatprep.subr.bf16.mxu0 0
    %408 = vmatpush1.bf16.msra.mxu0 0
    %409 = vmatprep.mubr.bf16.mxu0 0
    %410 = vmatmul.mubr.bf16.gmra.mrb[0].mxu0 %v327
    %v411 = vpop.f32.mrb[0].mxu0
    %v412 = vadd.f32 %v376, %v411
    %v413 = vpop.f32.mrb[0].mxu0
    %v414 = vpop.f32.mrb[0].mxu0
    %v415 = vpop.f32.mrb[0].mxu0
    %416 = vdwg.mxu0
    %v417 = vxor.u32 %v412, 2147483648
    %v418 = vmul.f32 %v417, 1.442695
    %v419 = vpow.pop %v418
    %v420 = vadd.f32 %v419, 1.0
    %v421 = vrcp.pop %v420
    %v422 = vmul.f32 1.0, %v421
    %v423 = vmul.f32 %v422, %v322
    %v424 = vpack.c.bf16 %v423, %v423
    %s425 = scalar_lea.vmem [#allocation8], 8
    %v426 = vld [vmem:[%s425] sm:$0xff]
    %v428 = vsel %vm148, %v424, 0
    %430 = vmatprep.subr.bf16.mxu0 0
    %431 = vmatpush1.bf16.msra.mxu0 %v268
    %432 = vmatprep.subr.bf16.mxu0 0
    %433 = vmatpush1.bf16.msra.mxu0 %v269
    %434 = vmatprep.subr.bf16.mxu0 0
    %435 = vmatpush1.bf16.msra.mxu0 0
    %436 = vmatprep.subr.bf16.mxu0 0
    %437 = vmatpush1.bf16.msra.mxu0 0
    %438 = vmatprep.subr.bf16.mxu0 0
    %439 = vmatpush1.bf16.msra.mxu0 0
    %440 = vmatprep.subr.bf16.mxu0 0
    %441 = vmatpush1.bf16.msra.mxu0 0
    %442 = vmatprep.subr.bf16.mxu0 0
    %443 = vmatpush1.bf16.msra.mxu0 0
    %444 = vmatprep.subr.bf16.mxu0 0
    %445 = vmatpush1.bf16.msra.mxu0 0
    %446 = vmatprep.subr.bf16.mxu0 0
    %447 = vmatpush1.bf16.msra.mxu0 0
    %448 = vmatprep.subr.bf16.mxu0 0
    %449 = vmatpush1.bf16.msra.mxu0 0
    %450 = vmatprep.subr.bf16.mxu0 0
    %451 = vmatpush1.bf16.msra.mxu0 0
    %452 = vmatprep.subr.bf16.mxu0 0
    %453 = vmatpush1.bf16.msra.mxu0 0
    %454 = vmatprep.subr.bf16.mxu0 0
    %455 = vmatpush1.bf16.msra.mxu0 0
    %456 = vmatprep.subr.bf16.mxu0 0
    %457 = vmatpush1.bf16.msra.mxu0 0
    %458 = vmatprep.subr.bf16.mxu0 0
    %459 = vmatpush1.bf16.msra.mxu0 0
    %460 = vmatprep.subr.bf16.mxu0 0
    %461 = vmatpush1.bf16.msra.mxu0 0
    %462 = vmatprep.mubr.bf16.mxu0 0
    %463 = vmatmul.mubr.bf16.gmra.mrb[0].mxu0 %v428
    %v464 = vpop.f32.mrb[0].mxu0
    %v465 = vadd.f32 %v426, %v464
    %v466 = vpop.f32.mrb[0].mxu0
    %v467 = vpop.f32.mrb[0].mxu0
    %v468 = vpop.f32.mrb[0].mxu0
    %469 = vdwg.mxu0
    %v470 = vtanh.pop %v465
    %v471 = vsub.f32 1.0, %v374
    %v472 = vmul.f32 %v471, %v470
    %v473 = vmul.f32 %v374, %v322
    %v474 = vadd.f32 %v472, %v473
    %s475 = scalar_lea.vmem [#allocation2], 16
    %v476 = vld [vmem:[%s475] sm:$0xff]
    %v477 = vmul.f32 %v476, %v474
    %v478 = vpack.c.bf16 %v477, %v477
    %s479 = scalar_lea.vmem [#allocation5], 16
    %v480 = vld [vmem:[%s479] sm:$0xff]
    %v482 = vsel %vm148, %v478, 0
    %484 = vmatprep.subr.bf16.mxu0 0
    %485 = vmatpush1.bf16.msra.mxu0 %v144
    %486 = vmatprep.subr.bf16.mxu0 0
    %487 = vmatpush1.bf16.msra.mxu0 %v145
    %488 = vmatprep.subr.bf16.mxu0 0
    %489 = vmatpush1.bf16.msra.mxu0 0
    %490 = vmatprep.subr.bf16.mxu0 0
    %491 = vmatpush1.bf16.msra.mxu0 0
    %492 = vmatprep.subr.bf16.mxu0 0
    %493 = vmatpush1.bf16.msra.mxu0 0
    %494 = vmatprep.subr.bf16.mxu0 0
    %495 = vmatpush1.bf16.msra.mxu0 0
    %496 = vmatprep.subr.bf16.mxu0 0
    %497 = vmatpush1.bf16.msra.mxu0 0
    %498 = vmatprep.subr.bf16.mxu0 0
    %499 = vmatpush1.bf16.msra.mxu0 0
    %500 = vmatprep.subr.bf16.mxu0 0
    %501 = vmatpush1.bf16.msra.mxu0 0
    %502 = vmatprep.subr.bf16.mxu0 0
    %503 = vmatpush1.bf16.msra.mxu0 0
    %504 = vmatprep.subr.bf16.mxu0 0
    %505 = vmatpush1.bf16.msra.mxu0 0
    %506 = vmatprep.subr.bf16.mxu0 0
    %507 = vmatpush1.bf16.msra.mxu0 0
    %508 = vmatprep.subr.bf16.mxu0 0
    %509 = vmatpush1.bf16.msra.mxu0 0
    %510 = vmatprep.subr.bf16.mxu0 0
    %511 = vmatpush1.bf16.msra.mxu0 0
    %512 = vmatprep.subr.bf16.mxu0 0
    %513 = vmatpush1.bf16.msra.mxu0 0
    %514 = vmatprep.subr.bf16.mxu0 0
    %515 = vmatpush1.bf16.msra.mxu0 0
    %516 = vmatprep.mubr.bf16.mxu0 0
    %517 = vmatmul.mubr.bf16.gmra.mrb[0].mxu0 %v482
    %v518 = vpop.f32.mrb[0].mxu0
    %v519 = vadd.f32 %v480, %v518
    %v520 = vpop.f32.mrb[0].mxu0
    %v521 = vpop.f32.mrb[0].mxu0
    %v522 = vpop.f32.mrb[0].mxu0
    %523 = vdwg.mxu0
    %v524 = vxor.u32 %v519, 2147483648
    %v525 = vmul.f32 %v524, 1.442695
    %v526 = vpow.pop %v525
    %v527 = vadd.f32 %v526, 1.0
    %v528 = vrcp.pop %v527
    %v529 = vmul.f32 1.0, %v528
    %s530 = scalar_lea.vmem [#allocation7], 16
    %v531 = vld [vmem:[%s530] sm:$0xff]
    %532 = vmatprep.subr.bf16.mxu0 0
    %533 = vmatpush1.bf16.msra.mxu0 %v207
    %534 = vmatprep.subr.bf16.mxu0 0
    %535 = vmatpush1.bf16.msra.mxu0 %v208
    %536 = vmatprep.subr.bf16.mxu0 0
    %537 = vmatpush1.bf16.msra.mxu0 0
    %538 = vmatprep.subr.bf16.mxu0 0
    %539 = vmatpush1.bf16.msra.mxu0 0
    %540 = vmatprep.subr.bf16.mxu0 0
    %541 = vmatpush1.bf16.msra.mxu0 0
    %542 = vmatprep.subr.bf16.mxu0 0
    %543 = vmatpush1.bf16.msra.mxu0 0
    %544 = vmatprep.subr.bf16.mxu0 0
    %545 = vmatpush1.bf16.msra.mxu0 0
    %546 = vmatprep.subr.bf16.mxu0 0
    %547 = vmatpush1.bf16.msra.mxu0 0
    %548 = vmatprep.subr.bf16.mxu0 0
    %549 = vmatpush1.bf16.msra.mxu0 0
    %550 = vmatprep.subr.bf16.mxu0 0
    %551 = vmatpush1.bf16.msra.mxu0 0
    %552 = vmatprep.subr.bf16.mxu0 0
    %553 = vmatpush1.bf16.msra.mxu0 0
    %554 = vmatprep.subr.bf16.mxu0 0
    %555 = vmatpush1.bf16.msra.mxu0 0
    %556 = vmatprep.subr.bf16.mxu0 0
    %557 = vmatpush1.bf16.msra.mxu0 0
    %558 = vmatprep.subr.bf16.mxu0 0
    %559 = vmatpush1.bf16.msra.mxu0 0
    %560 = vmatprep.subr.bf16.mxu0 0
    %561 = vmatpush1.bf16.msra.mxu0 0
    %562 = vmatprep.subr.bf16.mxu0 0
    %563 = vmatpush1.bf16.msra.mxu0 0
    %564 = vmatprep.mubr.bf16.mxu0 0
    %565 = vmatmul.mubr.bf16.gmra.mrb[0].mxu0 %v482
    %v566 = vpop.f32.mrb[0].mxu0
    %v567 = vadd.f32 %v531, %v566
    %v568 = vpop.f32.mrb[0].mxu0
    %v569 = vpop.f32.mrb[0].mxu0
    %v570 = vpop.f32.mrb[0].mxu0
    %571 = vdwg.mxu0
    %v572 = vxor.u32 %v567, 2147483648
    %v573 = vmul.f32 %v572, 1.442695
    %v574 = vpow.pop %v573
    %v575 = vadd.f32 %v574, 1.0
    %v576 = vrcp.pop %v575
    %v577 = vmul.f32 1.0, %v576
    %v578 = vmul.f32 %v577, %v477
    %v579 = vpack.c.bf16 %v578, %v578
    %s580 = scalar_lea.vmem [#allocation8], 16
    %v581 = vld [vmem:[%s580] sm:$0xff]
    %v583 = vsel %vm148, %v579, 0
    %585 = vmatprep.subr.bf16.mxu0 0
    %586 = vmatpush1.bf16.msra.mxu0 %v268
    %587 = vmatprep.subr.bf16.mxu0 0
    %588 = vmatpush1.bf16.msra.mxu0 %v269
    %589 = vmatprep.subr.bf16.mxu0 0
    %590 = vmatpush1.bf16.msra.mxu0 0
    %591 = vmatprep.subr.bf16.mxu0 0
    %592 = vmatpush1.bf16.msra.mxu0 0
    %593 = vmatprep.subr.bf16.mxu0 0
    %594 = vmatpush1.bf16.msra.mxu0 0
    %595 = vmatprep.subr.bf16.mxu0 0
    %596 = vmatpush1.bf16.msra.mxu0 0
    %597 = vmatprep.subr.bf16.mxu0 0
    %598 = vmatpush1.bf16.msra.mxu0 0
    %599 = vmatprep.subr.bf16.mxu0 0
    %600 = vmatpush1.bf16.msra.mxu0 0
    %601 = vmatprep.subr.bf16.mxu0 0
    %602 = vmatpush1.bf16.msra.mxu0 0
    %603 = vmatprep.subr.bf16.mxu0 0
    %604 = vmatpush1.bf16.msra.mxu0 0
    %605 = vmatprep.subr.bf16.mxu0 0
    %606 = vmatpush1.bf16.msra.mxu0 0
    %607 = vmatprep.subr.bf16.mxu0 0
    %608 = vmatpush1.bf16.msra.mxu0 0
    %609 = vmatprep.subr.bf16.mxu0 0
    %610 = vmatpush1.bf16.msra.mxu0 0
    %611 = vmatprep.subr.bf16.mxu0 0
    %612 = vmatpush1.bf16.msra.mxu0 0
    %613 = vmatprep.subr.bf16.mxu0 0
    %614 = vmatpush1.bf16.msra.mxu0 0
    %615 = vmatprep.subr.bf16.mxu0 0
    %616 = vmatpush1.bf16.msra.mxu0 0
    %617 = vmatprep.mubr.bf16.mxu0 0
    %618 = vmatmul.mubr.bf16.gmra.mrb[0].mxu0 %v583
    %v619 = vpop.f32.mrb[0].mxu0
    %v620 = vadd.f32 %v581, %v619
    %v621 = vpop.f32.mrb[0].mxu0
    %v622 = vpop.f32.mrb[0].mxu0
    %v623 = vpop.f32.mrb[0].mxu0
    %624 = vdwg.mxu0
    %v625 = vtanh.pop %v620
    %v626 = vsub.f32 1.0, %v529
    %v627 = vmul.f32 %v626, %v625
    %v628 = vmul.f32 %v529, %v477
    %v629 = vadd.f32 %v627, %v628
    %s630 = scalar_lea.vmem [#allocation2], 24
    %v631 = vld [vmem:[%s630] sm:$0xff]
    %v632 = vmul.f32 %v631, %v629
    %v633 = vpack.c.bf16 %v632, %v632
    %s634 = scalar_lea.vmem [#allocation5], 24
    %v635 = vld [vmem:[%s634] sm:$0xff]
    %v637 = vsel %vm148, %v633, 0
    %639 = vmatprep.subr.bf16.mxu0 0
    %640 = vmatpush1.bf16.msra.mxu0 %v144
    %641 = vmatprep.subr.bf16.mxu0 0
    %642 = vmatpush1.bf16.msra.mxu0 %v145
    %643 = vmatprep.subr.bf16.mxu0 0
    %644 = vmatpush1.bf16.msra.mxu0 0
    %645 = vmatprep.subr.bf16.mxu0 0
    %646 = vmatpush1.bf16.msra.mxu0 0
    %647 = vmatprep.subr.bf16.mxu0 0
    %648 = vmatpush1.bf16.msra.mxu0 0
    %649 = vmatprep.subr.bf16.mxu0 0
    %650 = vmatpush1.bf16.msra.mxu0 0
    %651 = vmatprep.subr.bf16.mxu0 0
    %652 = vmatpush1.bf16.msra.mxu0 0
    %653 = vmatprep.subr.bf16.mxu0 0
    %654 = vmatpush1.bf16.msra.mxu0 0
    %655 = vmatprep.subr.bf16.mxu0 0
    %656 = vmatpush1.bf16.msra.mxu0 0
    %657 = vmatprep.subr.bf16.mxu0 0
    %658 = vmatpush1.bf16.msra.mxu0 0
    %659 = vmatprep.subr.bf16.mxu0 0
    %660 = vmatpush1.bf16.msra.mxu0 0
    %661 = vmatprep.subr.bf16.mxu0 0
    %662 = vmatpush1.bf16.msra.mxu0 0
    %663 = vmatprep.subr.bf16.mxu0 0
    %664 = vmatpush1.bf16.msra.mxu0 0
    %665 = vmatprep.subr.bf16.mxu0 0
    %666 = vmatpush1.bf16.msra.mxu0 0
    %667 = vmatprep.subr.bf16.mxu0 0
    %668 = vmatpush1.bf16.msra.mxu0 0
    %669 = vmatprep.subr.bf16.mxu0 0
    %670 = vmatpush1.bf16.msra.mxu0 0
    %671 = vmatprep.mubr.bf16.mxu0 0
    %672 = vmatmul.mubr.bf16.gmra.mrb[0].mxu0 %v637
    %v673 = vpop.f32.mrb[0].mxu0
    %v674 = vadd.f32 %v635, %v673
    %v675 = vpop.f32.mrb[0].mxu0
    %v676 = vpop.f32.mrb[0].mxu0
    %v677 = vpop.f32.mrb[0].mxu0
    %678 = vdwg.mxu0
    %v679 = vxor.u32 %v674, 2147483648
    %v680 = vmul.f32 %v679, 1.442695
    %v681 = vpow.pop %v680
    %v682 = vadd.f32 %v681, 1.0
    %v683 = vrcp.pop %v682
    %v684 = vmul.f32 1.0, %v683
    %s685 = scalar_lea.vmem [#allocation7], 24
    %v686 = vld [vmem:[%s685] sm:$0xff]
    %687 = vmatprep.subr.bf16.mxu0 0
    %688 = vmatpush1.bf16.msra.mxu0 %v207
    %689 = vmatprep.subr.bf16.mxu0 0
    %690 = vmatpush1.bf16.msra.mxu0 %v208
    %691 = vmatprep.subr.bf16.mxu0 0
    %692 = vmatpush1.bf16.msra.mxu0 0
    %693 = vmatprep.subr.bf16.mxu0 0
    %694 = vmatpush1.bf16.msra.mxu0 0
    %695 = vmatprep.subr.bf16.mxu0 0
    %696 = vmatpush1.bf16.msra.mxu0 0
    %697 = vmatprep.subr.bf16.mxu0 0
    %698 = vmatpush1.bf16.msra.mxu0 0
    %699 = vmatprep.subr.bf16.mxu0 0
    %700 = vmatpush1.bf16.msra.mxu0 0
    %701 = vmatprep.subr.bf16.mxu0 0
    %702 = vmatpush1.bf16.msra.mxu0 0
    %703 = vmatprep.subr.bf16.mxu0 0
    %704 = vmatpush1.bf16.msra.mxu0 0
    %705 = vmatprep.subr.bf16.mxu0 0
    %706 = vmatpush1.bf16.msra.mxu0 0
    %707 = vmatprep.subr.bf16.mxu0 0
    %708 = vmatpush1.bf16.msra.mxu0 0
    %709 = vmatprep.subr.bf16.mxu0 0
    %710 = vmatpush1.bf16.msra.mxu0 0
    %711 = vmatprep.subr.bf16.mxu0 0
    %712 = vmatpush1.bf16.msra.mxu0 0
    %713 = vmatprep.subr.bf16.mxu0 0
    %714 = vmatpush1.bf16.msra.mxu0 0
    %715 = vmatprep.subr.bf16.mxu0 0
    %716 = vmatpush1.bf16.msra.mxu0 0
    %717 = vmatprep.subr.bf16.mxu0 0
    %718 = vmatpush1.bf16.msra.mxu0 0
    %719 = vmatprep.mubr.bf16.mxu0 0
    %720 = vmatmul.mubr.bf16.gmra.mrb[0].mxu0 %v637
    %v721 = vpop.f32.mrb[0].mxu0
    %v722 = vadd.f32 %v686, %v721
    %v723 = vpop.f32.mrb[0].mxu0
    %v724 = vpop.f32.mrb[0].mxu0
    %v725 = vpop.f32.mrb[0].mxu0
    %726 = vdwg.mxu0
    %v727 = vxor.u32 %v722, 2147483648
    %v728 = vmul.f32 %v727, 1.442695
    %v729 = vpow.pop %v728
    %v730 = vadd.f32 %v729, 1.0
    %v731 = vrcp.pop %v730
    %v732 = vmul.f32 1.0, %v731
    %v733 = vmul.f32 %v732, %v632
    %v734 = vpack.c.bf16 %v733, %v733
    %s735 = scalar_lea.vmem [#allocation8], 24
    %v736 = vld [vmem:[%s735] sm:$0xff]
    %v738 = vsel %vm148, %v734, 0
    %740 = vmatprep.subr.bf16.mxu0 0
    %741 = vmatpush1.bf16.msra.mxu0 %v268
    %742 = vmatprep.subr.bf16.mxu0 0
    %743 = vmatpush1.bf16.msra.mxu0 %v269
    %744 = vmatprep.subr.bf16.mxu0 0
    %745 = vmatpush1.bf16.msra.mxu0 0
    %746 = vmatprep.subr.bf16.mxu0 0
    %747 = vmatpush1.bf16.msra.mxu0 0
    %748 = vmatprep.subr.bf16.mxu0 0
    %749 = vmatpush1.bf16.msra.mxu0 0
    %750 = vmatprep.subr.bf16.mxu0 0
    %751 = vmatpush1.bf16.msra.mxu0 0
    %752 = vmatprep.subr.bf16.mxu0 0
    %753 = vmatpush1.bf16.msra.mxu0 0
    %754 = vmatprep.subr.bf16.mxu0 0
    %755 = vmatpush1.bf16.msra.mxu0 0
    %756 = vmatprep.subr.bf16.mxu0 0
    %757 = vmatpush1.bf16.msra.mxu0 0
    %758 = vmatprep.subr.bf16.mxu0 0
    %759 = vmatpush1.bf16.msra.mxu0 0
    %760 = vmatprep.subr.bf16.mxu0 0
    %761 = vmatpush1.bf16.msra.mxu0 0
    %762 = vmatprep.subr.bf16.mxu0 0
    %763 = vmatpush1.bf16.msra.mxu0 0
    %764 = vmatprep.subr.bf16.mxu0 0
    %765 = vmatpush1.bf16.msra.mxu0 0
    %766 = vmatprep.subr.bf16.mxu0 0
    %767 = vmatpush1.bf16.msra.mxu0 0
    %768 = vmatprep.subr.bf16.mxu0 0
    %769 = vmatpush1.bf16.msra.mxu0 0
    %770 = vmatprep.subr.bf16.mxu0 0
    %771 = vmatpush1.bf16.msra.mxu0 0
    %772 = vmatprep.mubr.bf16.mxu0 0
    %773 = vmatmul.mubr.bf16.gmra.mrb[0].mxu0 %v738
    %v774 = vpop.f32.mrb[0].mxu0
    %v775 = vadd.f32 %v736, %v774
    %v776 = vpop.f32.mrb[0].mxu0
    %v777 = vpop.f32.mrb[0].mxu0
    %v778 = vpop.f32.mrb[0].mxu0
    %779 = vdwg.mxu0
    %v780 = vtanh.pop %v775
    %v781 = vsub.f32 1.0, %v684
    %v782 = vmul.f32 %v781, %v780
    %v783 = vmul.f32 %v684, %v632
    %v784 = vadd.f32 %v782, %v783
    %s785 = scalar_lea.vmem [#allocation2], 32
    %v786 = vld [vmem:[%s785] sm:$0xff]
    %v787 = vmul.f32 %v786, %v784
    %v788 = vpack.c.bf16 %v787, %v787
    %s789 = scalar_lea.vmem [#allocation5], 32
    %v790 = vld [vmem:[%s789] sm:$0xff]
    %v792 = vsel %vm148, %v788, 0
    %794 = vmatprep.subr.bf16.mxu0 0
    %795 = vmatpush1.bf16.msra.mxu0 %v144
    %796 = vmatprep.subr.bf16.mxu0 0
    %797 = vmatpush1.bf16.msra.mxu0 %v145
    %798 = vmatprep.subr.bf16.mxu0 0
    %799 = vmatpush1.bf16.msra.mxu0 0
    %800 = vmatprep.subr.bf16.mxu0 0
    %801 = vmatpush1.bf16.msra.mxu0 0
    %802 = vmatprep.subr.bf16.mxu0 0
    %803 = vmatpush1.bf16.msra.mxu0 0
    %804 = vmatprep.subr.bf16.mxu0 0
    %805 = vmatpush1.bf16.msra.mxu0 0
    %806 = vmatprep.subr.bf16.mxu0 0
    %807 = vmatpush1.bf16.msra.mxu0 0
    %808 = vmatprep.subr.bf16.mxu0 0
    %809 = vmatpush1.bf16.msra.mxu0 0
    %810 = vmatprep.subr.bf16.mxu0 0
    %811 = vmatpush1.bf16.msra.mxu0 0
    %812 = vmatprep.subr.bf16.mxu0 0
    %813 = vmatpush1.bf16.msra.mxu0 0
    %814 = vmatprep.subr.bf16.mxu0 0
    %815 = vmatpush1.bf16.msra.mxu0 0
    %816 = vmatprep.subr.bf16.mxu0 0
    %817 = vmatpush1.bf16.msra.mxu0 0
    %818 = vmatprep.subr.bf16.mxu0 0
    %819 = vmatpush1.bf16.msra.mxu0 0
    %820 = vmatprep.subr.bf16.mxu0 0
    %821 = vmatpush1.bf16.msra.mxu0 0
    %822 = vmatprep.subr.bf16.mxu0 0
    %823 = vmatpush1.bf16.msra.mxu0 0
    %824 = vmatprep.subr.bf16.mxu0 0
    %825 = vmatpush1.bf16.msra.mxu0 0
    %826 = vmatprep.mubr.bf16.mxu0 0
    %827 = vmatmul.mubr.bf16.gmra.mrb[0].mxu0 %v792
    %v828 = vpop.f32.mrb[0].mxu0
    %v829 = vadd.f32 %v790, %v828
    %v830 = vpop.f32.mrb[0].mxu0
    %v831 = vpop.f32.mrb[0].mxu0
    %v832 = vpop.f32.mrb[0].mxu0
    %833 = vdwg.mxu0
    %v834 = vxor.u32 %v829, 2147483648
    %v835 = vmul.f32 %v834, 1.442695
    %v836 = vpow.pop %v835
    %v837 = vadd.f32 %v836, 1.0
    %v838 = vrcp.pop %v837
    %v839 = vmul.f32 1.0, %v838
    %s840 = scalar_lea.vmem [#allocation7], 32
    %v841 = vld [vmem:[%s840] sm:$0xff]
    %842 = vmatprep.subr.bf16.mxu0 0
    %843 = vmatpush1.bf16.msra.mxu0 %v207
    %844 = vmatprep.subr.bf16.mxu0 0
    %845 = vmatpush1.bf16.msra.mxu0 %v208
    %846 = vmatprep.subr.bf16.mxu0 0
    %847 = vmatpush1.bf16.msra.mxu0 0
    %848 = vmatprep.subr.bf16.mxu0 0
    %849 = vmatpush1.bf16.msra.mxu0 0
    %850 = vmatprep.subr.bf16.mxu0 0
    %851 = vmatpush1.bf16.msra.mxu0 0
    %852 = vmatprep.subr.bf16.mxu0 0
    %853 = vmatpush1.bf16.msra.mxu0 0
    %854 = vmatprep.subr.bf16.mxu0 0
    %855 = vmatpush1.bf16.msra.mxu0 0
    %856 = vmatprep.subr.bf16.mxu0 0
    %857 = vmatpush1.bf16.msra.mxu0 0
    %858 = vmatprep.subr.bf16.mxu0 0
    %859 = vmatpush1.bf16.msra.mxu0 0
    %860 = vmatprep.subr.bf16.mxu0 0
    %861 = vmatpush1.bf16.msra.mxu0 0
    %862 = vmatprep.subr.bf16.mxu0 0
    %863 = vmatpush1.bf16.msra.mxu0 0
    %864 = vmatprep.subr.bf16.mxu0 0
    %865 = vmatpush1.bf16.msra.mxu0 0
    %866 = vmatprep.subr.bf16.mxu0 0
    %867 = vmatpush1.bf16.msra.mxu0 0
    %868 = vmatprep.subr.bf16.mxu0 0
    %869 = vmatpush1.bf16.msra.mxu0 0
    %870 = vmatprep.subr.bf16.mxu0 0
    %871 = vmatpush1.bf16.msra.mxu0 0
    %872 = vmatprep.subr.bf16.mxu0 0
    %873 = vmatpush1.bf16.msra.mxu0 0
    %874 = vmatprep.mubr.bf16.mxu0 0
    %875 = vmatmul.mubr.bf16.gmra.mrb[0].mxu0 %v792
    %v876 = vpop.f32.mrb[0].mxu0
    %v877 = vadd.f32 %v841, %v876
    %v878 = vpop.f32.mrb[0].mxu0
    %v879 = vpop.f32.mrb[0].mxu0
    %v880 = vpop.f32.mrb[0].mxu0
    %881 = vdwg.mxu0
    %v882 = vxor.u32 %v877, 2147483648
    %v883 = vmul.f32 %v882, 1.442695
    %v884 = vpow.pop %v883
    %v885 = vadd.f32 %v884, 1.0
    %v886 = vrcp.pop %v885
    %v887 = vmul.f32 1.0, %v886
    %v888 = vmul.f32 %v887, %v787
    %v889 = vpack.c.bf16 %v888, %v888
    %s890 = scalar_lea.vmem [#allocation8], 32
    %v891 = vld [vmem:[%s890] sm:$0xff]
    %v893 = vsel %vm148, %v889, 0
    %895 = vmatprep.subr.bf16.mxu0 0
    %896 = vmatpush1.bf16.msra.mxu0 %v268
    %897 = vmatprep.subr.bf16.mxu0 0
    %898 = vmatpush1.bf16.msra.mxu0 %v269
    %899 = vmatprep.subr.bf16.mxu0 0
    %900 = vmatpush1.bf16.msra.mxu0 0
    %901 = vmatprep.subr.bf16.mxu0 0
    %902 = vmatpush1.bf16.msra.mxu0 0
    %903 = vmatprep.subr.bf16.mxu0 0
    %904 = vmatpush1.bf16.msra.mxu0 0
    %905 = vmatprep.subr.bf16.mxu0 0
    %906 = vmatpush1.bf16.msra.mxu0 0
    %907 = vmatprep.subr.bf16.mxu0 0
    %908 = vmatpush1.bf16.msra.mxu0 0
    %909 = vmatprep.subr.bf16.mxu0 0
    %910 = vmatpush1.bf16.msra.mxu0 0
    %911 = vmatprep.subr.bf16.mxu0 0
    %912 = vmatpush1.bf16.msra.mxu0 0
    %913 = vmatprep.subr.bf16.mxu0 0
    %914 = vmatpush1.bf16.msra.mxu0 0
    %915 = vmatprep.subr.bf16.mxu0 0
    %916 = vmatpush1.bf16.msra.mxu0 0
    %917 = vmatprep.subr.bf16.mxu0 0
    %918 = vmatpush1.bf16.msra.mxu0 0
    %919 = vmatprep.subr.bf16.mxu0 0
    %920 = vmatpush1.bf16.msra.mxu0 0
    %921 = vmatprep.subr.bf16.mxu0 0
    %922 = vmatpush1.bf16.msra.mxu0 0
    %923 = vmatprep.subr.bf16.mxu0 0
    %924 = vmatpush1.bf16.msra.mxu0 0
    %925 = vmatprep.subr.bf16.mxu0 0
    %926 = vmatpush1.bf16.msra.mxu0 0
    %927 = vmatprep.mubr.bf16.mxu0 0
    %928 = vmatmul.mubr.bf16.gmra.mrb[0].mxu0 %v893
    %v929 = vpop.f32.mrb[0].mxu0
    %v930 = vadd.f32 %v891, %v929
    %v931 = vpop.f32.mrb[0].mxu0
    %v932 = vpop.f32.mrb[0].mxu0
    %v933 = vpop.f32.mrb[0].mxu0
    %934 = vdwg.mxu0
    %v935 = vtanh.pop %v930
    %v936 = vsub.f32 1.0, %v839
    %v937 = vmul.f32 %v936, %v935
    %v938 = vmul.f32 %v839, %v787
    %v939 = vadd.f32 %v937, %v938
    %s940 = scalar_lea.vmem [#allocation2], 40
    %v941 = vld [vmem:[%s940] sm:$0xff]
    %v942 = vmul.f32 %v941, %v939
    %v943 = vpack.c.bf16 %v942, %v942
    %s944 = scalar_lea.vmem [#allocation5], 40
    %v945 = vld [vmem:[%s944] sm:$0xff]
    %v947 = vsel %vm148, %v943, 0
    %949 = vmatprep.subr.bf16.mxu0 0
    %950 = vmatpush1.bf16.msra.mxu0 %v144
    %951 = vmatprep.subr.bf16.mxu0 0
    %952 = vmatpush1.bf16.msra.mxu0 %v145
    %953 = vmatprep.subr.bf16.mxu0 0
    %954 = vmatpush1.bf16.msra.mxu0 0
    %955 = vmatprep.subr.bf16.mxu0 0
    %956 = vmatpush1.bf16.msra.mxu0 0
    %957 = vmatprep.subr.bf16.mxu0 0
    %958 = vmatpush1.bf16.msra.mxu0 0
    %959 = vmatprep.subr.bf16.mxu0 0
    %960 = vmatpush1.bf16.msra.mxu0 0
    %961 = vmatprep.subr.bf16.mxu0 0
    %962 = vmatpush1.bf16.msra.mxu0 0
    %963 = vmatprep.subr.bf16.mxu0 0
    %964 = vmatpush1.bf16.msra.mxu0 0
    %965 = vmatprep.subr.bf16.mxu0 0
    %966 = vmatpush1.bf16.msra.mxu0 0
    %967 = vmatprep.subr.bf16.mxu0 0
    %968 = vmatpush1.bf16.msra.mxu0 0
    %969 = vmatprep.subr.bf16.mxu0 0
    %970 = vmatpush1.bf16.msra.mxu0 0
    %971 = vmatprep.subr.bf16.mxu0 0
    %972 = vmatpush1.bf16.msra.mxu0 0
    %973 = vmatprep.subr.bf16.mxu0 0
    %974 = vmatpush1.bf16.msra.mxu0 0
    %975 = vmatprep.subr.bf16.mxu0 0
    %976 = vmatpush1.bf16.msra.mxu0 0
    %977 = vmatprep.subr.bf16.mxu0 0
    %978 = vmatpush1.bf16.msra.mxu0 0
    %979 = vmatprep.subr.bf16.mxu0 0
    %980 = vmatpush1.bf16.msra.mxu0 0
    %981 = vmatprep.mubr.bf16.mxu0 0
    %982 = vmatmul.mubr.bf16.gmra.mrb[0].mxu0 %v947
    %v983 = vpop.f32.mrb[0].mxu0
    %v984 = vadd.f32 %v945, %v983
    %v985 = vpop.f32.mrb[0].mxu0
    %v986 = vpop.f32.mrb[0].mxu0
    %v987 = vpop.f32.mrb[0].mxu0
    %988 = vdwg.mxu0
    %v989 = vxor.u32 %v984, 2147483648
    %v990 = vmul.f32 %v989, 1.442695
    %v991 = vpow.pop %v990
    %v992 = vadd.f32 %v991, 1.0
    %v993 = vrcp.pop %v992
    %v994 = vmul.f32 1.0, %v993
    %s995 = scalar_lea.vmem [#allocation7], 40
    %v996 = vld [vmem:[%s995] sm:$0xff]
    %997 = vmatprep.subr.bf16.mxu0 0
    %998 = vmatpush1.bf16.msra.mxu0 %v207
    %999 = vmatprep.subr.bf16.mxu0 0
    %1000 = vmatpush1.bf16.msra.mxu0 %v208
    %1001 = vmatprep.subr.bf16.mxu0 0
    %1002 = vmatpush1.bf16.msra.mxu0 0
    %1003 = vmatprep.subr.bf16.mxu0 0
    %1004 = vmatpush1.bf16.msra.mxu0 0
    %1005 = vmatprep.subr.bf16.mxu0 0
    %1006 = vmatpush1.bf16.msra.mxu0 0
    %1007 = vmatprep.subr.bf16.mxu0 0
    %1008 = vmatpush1.bf16.msra.mxu0 0
    %1009 = vmatprep.subr.bf16.mxu0 0
    %1010 = vmatpush1.bf16.msra.mxu0 0
    %1011 = vmatprep.subr.bf16.mxu0 0
    %1012 = vmatpush1.bf16.msra.mxu0 0
    %1013 = vmatprep.subr.bf16.mxu0 0
    %1014 = vmatpush1.bf16.msra.mxu0 0
    %1015 = vmatprep.subr.bf16.mxu0 0
    %1016 = vmatpush1.bf16.msra.mxu0 0
    %1017 = vmatprep.subr.bf16.mxu0 0
    %1018 = vmatpush1.bf16.msra.mxu0 0
    %1019 = vmatprep.subr.bf16.mxu0 0
    %1020 = vmatpush1.bf16.msra.mxu0 0
    %1021 = vmatprep.subr.bf16.mxu0 0
    %1022 = vmatpush1.bf16.msra.mxu0 0
    %1023 = vmatprep.subr.bf16.mxu0 0
    %1024 = vmatpush1.bf16.msra.mxu0 0
    %1025 = vmatprep.subr.bf16.mxu0 0
    %1026 = vmatpush1.bf16.msra.mxu0 0
    %1027 = vmatprep.subr.bf16.mxu0 0
    %1028 = vmatpush1.bf16.msra.mxu0 0
    %1029 = vmatprep.mubr.bf16.mxu0 0
    %1030 = vmatmul.mubr.bf16.gmra.mrb[0].mxu0 %v947
    %v1031 = vpop.f32.mrb[0].mxu0
    %v1032 = vadd.f32 %v996, %v1031
    %v1033 = vpop.f32.mrb[0].mxu0
    %v1034 = vpop.f32.mrb[0].mxu0
    %v1035 = vpop.f32.mrb[0].mxu0
    %1036 = vdwg.mxu0
    %v1037 = vxor.u32 %v1032, 2147483648
    %v1038 = vmul.f32 %v1037, 1.442695
    %v1039 = vpow.pop %v1038
    %v1040 = vadd.f32 %v1039, 1.0
    %v1041 = vrcp.pop %v1040
    %v1042 = vmul.f32 1.0, %v1041
    %v1043 = vmul.f32 %v1042, %v942
    %v1044 = vpack.c.bf16 %v1043, %v1043
    %s1045 = scalar_lea.vmem [#allocation8], 40
    %v1046 = vld [vmem:[%s1045] sm:$0xff]
    %v1048 = vsel %vm148, %v1044, 0
    %1050 = vmatprep.subr.bf16.mxu0 0
    %1051 = vmatpush1.bf16.msra.mxu0 %v268
    %1052 = vmatprep.subr.bf16.mxu0 0
    %1053 = vmatpush1.bf16.msra.mxu0 %v269
    %1054 = vmatprep.subr.bf16.mxu0 0
    %1055 = vmatpush1.bf16.msra.mxu0 0
    %1056 = vmatprep.subr.bf16.mxu0 0
    %1057 = vmatpush1.bf16.msra.mxu0 0
    %1058 = vmatprep.subr.bf16.mxu0 0
    %1059 = vmatpush1.bf16.msra.mxu0 0
    %1060 = vmatprep.subr.bf16.mxu0 0
    %1061 = vmatpush1.bf16.msra.mxu0 0
    %1062 = vmatprep.subr.bf16.mxu0 0
    %1063 = vmatpush1.bf16.msra.mxu0 0
    %1064 = vmatprep.subr.bf16.mxu0 0
    %1065 = vmatpush1.bf16.msra.mxu0 0
    %1066 = vmatprep.subr.bf16.mxu0 0
    %1067 = vmatpush1.bf16.msra.mxu0 0
    %1068 = vmatprep.subr.bf16.mxu0 0
    %1069 = vmatpush1.bf16.msra.mxu0 0
    %1070 = vmatprep.subr.bf16.mxu0 0
    %1071 = vmatpush1.bf16.msra.mxu0 0
    %1072 = vmatprep.subr.bf16.mxu0 0
    %1073 = vmatpush1.bf16.msra.mxu0 0
    %1074 = vmatprep.subr.bf16.mxu0 0
    %1075 = vmatpush1.bf16.msra.mxu0 0
    %1076 = vmatprep.subr.bf16.mxu0 0
    %1077 = vmatpush1.bf16.msra.mxu0 0
    %1078 = vmatprep.subr.bf16.mxu0 0
    %1079 = vmatpush1.bf16.msra.mxu0 0
    %1080 = vmatprep.subr.bf16.mxu0 0
    %1081 = vmatpush1.bf16.msra.mxu0 0
    %1082 = vmatprep.mubr.bf16.mxu0 0
    %1083 = vmatmul.mubr.bf16.gmra.mrb[0].mxu0 %v1048
    %v1084 = vpop.f32.mrb[0].mxu0
    %v1085 = vadd.f32 %v1046, %v1084
    %v1086 = vpop.f32.mrb[0].mxu0
    %v1087 = vpop.f32.mrb[0].mxu0
    %v1088 = vpop.f32.mrb[0].mxu0
    %1089 = vdwg.mxu0
    %v1090 = vtanh.pop %v1085
    %v1091 = vsub.f32 1.0, %v994
    %v1092 = vmul.f32 %v1091, %v1090
    %v1093 = vmul.f32 %v994, %v942
    %v1094 = vadd.f32 %v1092, %v1093
    %s1095 = scalar_lea.vmem [#allocation2], 48
    %v1096 = vld [vmem:[%s1095] sm:$0xff]
    %v1097 = vmul.f32 %v1096, %v1094
    %v1098 = vpack.c.bf16 %v1097, %v1097
    %s1099 = scalar_lea.vmem [#allocation5], 48
    %v1100 = vld [vmem:[%s1099] sm:$0xff]
    %v1102 = vsel %vm148, %v1098, 0
    %1104 = vmatprep.subr.bf16.mxu0 0
    %1105 = vmatpush1.bf16.msra.mxu0 %v144
    %1106 = vmatprep.subr.bf16.mxu0 0
    %1107 = vmatpush1.bf16.msra.mxu0 %v145
    %1108 = vmatprep.subr.bf16.mxu0 0
    %1109 = vmatpush1.bf16.msra.mxu0 0
    %1110 = vmatprep.subr.bf16.mxu0 0
    %1111 = vmatpush1.bf16.msra.mxu0 0
    %1112 = vmatprep.subr.bf16.mxu0 0
    %1113 = vmatpush1.bf16.msra.mxu0 0
    %1114 = vmatprep.subr.bf16.mxu0 0
    %1115 = vmatpush1.bf16.msra.mxu0 0
    %1116 = vmatprep.subr.bf16.mxu0 0
    %1117 = vmatpush1.bf16.msra.mxu0 0
    %1118 = vmatprep.subr.bf16.mxu0 0
    %1119 = vmatpush1.bf16.msra.mxu0 0
    %1120 = vmatprep.subr.bf16.mxu0 0
    %1121 = vmatpush1.bf16.msra.mxu0 0
    %1122 = vmatprep.subr.bf16.mxu0 0
    %1123 = vmatpush1.bf16.msra.mxu0 0
    %1124 = vmatprep.subr.bf16.mxu0 0
    %1125 = vmatpush1.bf16.msra.mxu0 0
    %1126 = vmatprep.subr.bf16.mxu0 0
    %1127 = vmatpush1.bf16.msra.mxu0 0
    %1128 = vmatprep.subr.bf16.mxu0 0
    %1129 = vmatpush1.bf16.msra.mxu0 0
    %1130 = vmatprep.subr.bf16.mxu0 0
    %1131 = vmatpush1.bf16.msra.mxu0 0
    %1132 = vmatprep.subr.bf16.mxu0 0
    %1133 = vmatpush1.bf16.msra.mxu0 0
    %1134 = vmatprep.subr.bf16.mxu0 0
    %1135 = vmatpush1.bf16.msra.mxu0 0
    %1136 = vmatprep.mubr.bf16.mxu0 0
    %1137 = vmatmul.mubr.bf16.gmra.mrb[0].mxu0 %v1102
    %v1138 = vpop.f32.mrb[0].mxu0
    %v1139 = vadd.f32 %v1100, %v1138
    %v1140 = vpop.f32.mrb[0].mxu0
    %v1141 = vpop.f32.mrb[0].mxu0
    %v1142 = vpop.f32.mrb[0].mxu0
    %1143 = vdwg.mxu0
    %v1144 = vxor.u32 %v1139, 2147483648
    %v1145 = vmul.f32 %v1144, 1.442695
    %v1146 = vpow.pop %v1145
    %v1147 = vadd.f32 %v1146, 1.0
    %v1148 = vrcp.pop %v1147
    %v1149 = vmul.f32 1.0, %v1148
    %s1150 = scalar_lea.vmem [#allocation7], 48
    %v1151 = vld [vmem:[%s1150] sm:$0xff]
    %1152 = vmatprep.subr.bf16.mxu0 0
    %1153 = vmatpush1.bf16.msra.mxu0 %v207
    %1154 = vmatprep.subr.bf16.mxu0 0
    %1155 = vmatpush1.bf16.msra.mxu0 %v208
    %1156 = vmatprep.subr.bf16.mxu0 0
    %1157 = vmatpush1.bf16.msra.mxu0 0
    %1158 = vmatprep.subr.bf16.mxu0 0
    %1159 = vmatpush1.bf16.msra.mxu0 0
    %1160 = vmatprep.subr.bf16.mxu0 0
    %1161 = vmatpush1.bf16.msra.mxu0 0
    %1162 = vmatprep.subr.bf16.mxu0 0
    %1163 = vmatpush1.bf16.msra.mxu0 0
    %1164 = vmatprep.subr.bf16.mxu0 0
    %1165 = vmatpush1.bf16.msra.mxu0 0
    %1166 = vmatprep.subr.bf16.mxu0 0
    %1167 = vmatpush1.bf16.msra.mxu0 0
    %1168 = vmatprep.subr.bf16.mxu0 0
    %1169 = vmatpush1.bf16.msra.mxu0 0
    %1170 = vmatprep.subr.bf16.mxu0 0
    %1171 = vmatpush1.bf16.msra.mxu0 0
    %1172 = vmatprep.subr.bf16.mxu0 0
    %1173 = vmatpush1.bf16.msra.mxu0 0
    %1174 = vmatprep.subr.bf16.mxu0 0
    %1175 = vmatpush1.bf16.msra.mxu0 0
    %1176 = vmatprep.subr.bf16.mxu0 0
    %1177 = vmatpush1.bf16.msra.mxu0 0
    %1178 = vmatprep.subr.bf16.mxu0 0
    %1179 = vmatpush1.bf16.msra.mxu0 0
    %1180 = vmatprep.subr.bf16.mxu0 0
    %1181 = vmatpush1.bf16.msra.mxu0 0
    %1182 = vmatprep.subr.bf16.mxu0 0
    %1183 = vmatpush1.bf16.msra.mxu0 0
    %1184 = vmatprep.mubr.bf16.mxu0 0
    %1185 = vmatmul.mubr.bf16.gmra.mrb[0].mxu0 %v1102
    %v1186 = vpop.f32.mrb[0].mxu0
    %v1187 = vadd.f32 %v1151, %v1186
    %v1188 = vpop.f32.mrb[0].mxu0
    %v1189 = vpop.f32.mrb[0].mxu0
    %v1190 = vpop.f32.mrb[0].mxu0
    %1191 = vdwg.mxu0
    %v1192 = vxor.u32 %v1187, 2147483648
    %v1193 = vmul.f32 %v1192, 1.442695
    %v1194 = vpow.pop %v1193
    %v1195 = vadd.f32 %v1194, 1.0
    %v1196 = vrcp.pop %v1195
    %v1197 = vmul.f32 1.0, %v1196
    %v1198 = vmul.f32 %v1197, %v1097
    %v1199 = vpack.c.bf16 %v1198, %v1198
    %s1200 = scalar_lea.vmem [#allocation8], 48
    %v1201 = vld [vmem:[%s1200] sm:$0xff]
    %v1203 = vsel %vm148, %v1199, 0
    %1205 = vmatprep.subr.bf16.mxu0 0
    %1206 = vmatpush1.bf16.msra.mxu0 %v268
    %1207 = vmatprep.subr.bf16.mxu0 0
    %1208 = vmatpush1.bf16.msra.mxu0 %v269
    %1209 = vmatprep.subr.bf16.mxu0 0
    %1210 = vmatpush1.bf16.msra.mxu0 0
    %1211 = vmatprep.subr.bf16.mxu0 0
    %1212 = vmatpush1.bf16.msra.mxu0 0
    %1213 = vmatprep.subr.bf16.mxu0 0
    %1214 = vmatpush1.bf16.msra.mxu0 0
    %1215 = vmatprep.subr.bf16.mxu0 0
    %1216 = vmatpush1.bf16.msra.mxu0 0
    %1217 = vmatprep.subr.bf16.mxu0 0
    %1218 = vmatpush1.bf16.msra.mxu0 0
    %1219 = vmatprep.subr.bf16.mxu0 0
    %1220 = vmatpush1.bf16.msra.mxu0 0
    %1221 = vmatprep.subr.bf16.mxu0 0
    %1222 = vmatpush1.bf16.msra.mxu0 0
    %1223 = vmatprep.subr.bf16.mxu0 0
    %1224 = vmatpush1.bf16.msra.mxu0 0
    %1225 = vmatprep.subr.bf16.mxu0 0
    %1226 = vmatpush1.bf16.msra.mxu0 0
    %1227 = vmatprep.subr.bf16.mxu0 0
    %1228 = vmatpush1.bf16.msra.mxu0 0
    %1229 = vmatprep.subr.bf16.mxu0 0
    %1230 = vmatpush1.bf16.msra.mxu0 0
    %1231 = vmatprep.subr.bf16.mxu0 0
    %1232 = vmatpush1.bf16.msra.mxu0 0
    %1233 = vmatprep.subr.bf16.mxu0 0
    %1234 = vmatpush1.bf16.msra.mxu0 0
    %1235 = vmatprep.subr.bf16.mxu0 0
    %1236 = vmatpush1.bf16.msra.mxu0 0
    %1237 = vmatprep.mubr.bf16.mxu0 0
    %1238 = vmatmul.mubr.bf16.gmra.mrb[0].mxu0 %v1203
    %v1239 = vpop.f32.mrb[0].mxu0
    %v1240 = vadd.f32 %v1201, %v1239
    %v1241 = vpop.f32.mrb[0].mxu0
    %v1242 = vpop.f32.mrb[0].mxu0
    %v1243 = vpop.f32.mrb[0].mxu0
    %1244 = vdwg.mxu0
    %v1245 = vtanh.pop %v1240
    %v1246 = vsub.f32 1.0, %v1149
    %v1247 = vmul.f32 %v1246, %v1245
    %v1248 = vmul.f32 %v1149, %v1097
    %v1249 = vadd.f32 %v1247, %v1248
    %s1250 = scalar_lea.vmem [#allocation2], 56
    %v1251 = vld [vmem:[%s1250] sm:$0xff]
    %v1252 = vmul.f32 %v1251, %v1249
    %v1253 = vpack.c.bf16 %v1252, %v1252
    %s1254 = scalar_lea.vmem [#allocation5], 56
    %v1255 = vld [vmem:[%s1254] sm:$0xff]
    %v1257 = vsel %vm148, %v1253, 0
    %1259 = vmatprep.subr.bf16.mxu0 0
    %1260 = vmatpush1.bf16.msra.mxu0 %v144
    %1261 = vmatprep.subr.bf16.mxu0 0
    %1262 = vmatpush1.bf16.msra.mxu0 %v145
    %1263 = vmatprep.subr.bf16.mxu0 0
    %1264 = vmatpush1.bf16.msra.mxu0 0
    %1265 = vmatprep.subr.bf16.mxu0 0
    %1266 = vmatpush1.bf16.msra.mxu0 0
    %1267 = vmatprep.subr.bf16.mxu0 0
    %1268 = vmatpush1.bf16.msra.mxu0 0
    %1269 = vmatprep.subr.bf16.mxu0 0
    %1270 = vmatpush1.bf16.msra.mxu0 0
    %1271 = vmatprep.subr.bf16.mxu0 0
    %1272 = vmatpush1.bf16.msra.mxu0 0
    %1273 = vmatprep.subr.bf16.mxu0 0
    %1274 = vmatpush1.bf16.msra.mxu0 0
    %1275 = vmatprep.subr.bf16.mxu0 0
    %1276 = vmatpush1.bf16.msra.mxu0 0
    %1277 = vmatprep.subr.bf16.mxu0 0
    %1278 = vmatpush1.bf16.msra.mxu0 0
    %1279 = vmatprep.subr.bf16.mxu0 0
    %1280 = vmatpush1.bf16.msra.mxu0 0
    %1281 = vmatprep.subr.bf16.mxu0 0
    %1282 = vmatpush1.bf16.msra.mxu0 0
    %1283 = vmatprep.subr.bf16.mxu0 0
    %1284 = vmatpush1.bf16.msra.mxu0 0
    %1285 = vmatprep.subr.bf16.mxu0 0
    %1286 = vmatpush1.bf16.msra.mxu0 0
    %1287 = vmatprep.subr.bf16.mxu0 0
    %1288 = vmatpush1.bf16.msra.mxu0 0
    %1289 = vmatprep.subr.bf16.mxu0 0
    %1290 = vmatpush1.bf16.msra.mxu0 0
    %1291 = vmatprep.mubr.bf16.mxu0 0
    %1292 = vmatmul.mubr.bf16.gmra.mrb[0].mxu0 %v1257
    %v1293 = vpop.f32.mrb[0].mxu0
    %v1294 = vadd.f32 %v1255, %v1293
    %v1295 = vpop.f32.mrb[0].mxu0
    %v1296 = vpop.f32.mrb[0].mxu0
    %v1297 = vpop.f32.mrb[0].mxu0
    %1298 = vdwg.mxu0
    %v1299 = vxor.u32 %v1294, 2147483648
    %v1300 = vmul.f32 %v1299, 1.442695
    %v1301 = vpow.pop %v1300
    %v1302 = vadd.f32 %v1301, 1.0
    %v1303 = vrcp.pop %v1302
    %v1304 = vmul.f32 1.0, %v1303
    %s1305 = scalar_lea.vmem [#allocation7], 56
    %v1306 = vld [vmem:[%s1305] sm:$0xff]
    %1307 = vmatprep.subr.bf16.mxu0 0
    %1308 = vmatpush1.bf16.msra.mxu0 %v207
    %1309 = vmatprep.subr.bf16.mxu0 0
    %1310 = vmatpush1.bf16.msra.mxu0 %v208
    %1311 = vmatprep.subr.bf16.mxu0 0
    %1312 = vmatpush1.bf16.msra.mxu0 0
    %1313 = vmatprep.subr.bf16.mxu0 0
    %1314 = vmatpush1.bf16.msra.mxu0 0
    %1315 = vmatprep.subr.bf16.mxu0 0
    %1316 = vmatpush1.bf16.msra.mxu0 0
    %1317 = vmatprep.subr.bf16.mxu0 0
    %1318 = vmatpush1.bf16.msra.mxu0 0
    %1319 = vmatprep.subr.bf16.mxu0 0
    %1320 = vmatpush1.bf16.msra.mxu0 0
    %1321 = vmatprep.subr.bf16.mxu0 0
    %1322 = vmatpush1.bf16.msra.mxu0 0
    %1323 = vmatprep.subr.bf16.mxu0 0
    %1324 = vmatpush1.bf16.msra.mxu0 0
    %1325 = vmatprep.subr.bf16.mxu0 0
    %1326 = vmatpush1.bf16.msra.mxu0 0
    %1327 = vmatprep.subr.bf16.mxu0 0
    %1328 = vmatpush1.bf16.msra.mxu0 0
    %1329 = vmatprep.subr.bf16.mxu0 0
    %1330 = vmatpush1.bf16.msra.mxu0 0
    %1331 = vmatprep.subr.bf16.mxu0 0
    %1332 = vmatpush1.bf16.msra.mxu0 0
    %1333 = vmatprep.subr.bf16.mxu0 0
    %1334 = vmatpush1.bf16.msra.mxu0 0
    %1335 = vmatprep.subr.bf16.mxu0 0
    %1336 = vmatpush1.bf16.msra.mxu0 0
    %1337 = vmatprep.subr.bf16.mxu0 0
    %1338 = vmatpush1.bf16.msra.mxu0 0
    %1339 = vmatprep.mubr.bf16.mxu0 0
    %1340 = vmatmul.mubr.bf16.gmra.mrb[0].mxu0 %v1257
    %v1341 = vpop.f32.mrb[0].mxu0
    %v1342 = vadd.f32 %v1306, %v1341
    %v1343 = vpop.f32.mrb[0].mxu0
    %v1344 = vpop.f32.mrb[0].mxu0
    %v1345 = vpop.f32.mrb[0].mxu0
    %1346 = vdwg.mxu0
    %v1347 = vxor.u32 %v1342, 2147483648
    %v1348 = vmul.f32 %v1347, 1.442695
    %v1349 = vpow.pop %v1348
    %v1350 = vadd.f32 %v1349, 1.0
    %v1351 = vrcp.pop %v1350
    %v1352 = vmul.f32 1.0, %v1351
    %v1353 = vmul.f32 %v1352, %v1252
    %v1354 = vpack.c.bf16 %v1353, %v1353
    %s1355 = scalar_lea.vmem [#allocation8], 56
    %v1356 = vld [vmem:[%s1355] sm:$0xff]
    %v1358 = vsel %vm148, %v1354, 0
    %1360 = vmatprep.subr.bf16.mxu0 0
    %1361 = vmatpush1.bf16.msra.mxu0 %v268
    %1362 = vmatprep.subr.bf16.mxu0 0
    %1363 = vmatpush1.bf16.msra.mxu0 %v269
    %1364 = vmatprep.subr.bf16.mxu0 0
    %1365 = vmatpush1.bf16.msra.mxu0 0
    %1366 = vmatprep.subr.bf16.mxu0 0
    %1367 = vmatpush1.bf16.msra.mxu0 0
    %1368 = vmatprep.subr.bf16.mxu0 0
    %1369 = vmatpush1.bf16.msra.mxu0 0
    %1370 = vmatprep.subr.bf16.mxu0 0
    %1371 = vmatpush1.bf16.msra.mxu0 0
    %1372 = vmatprep.subr.bf16.mxu0 0
    %1373 = vmatpush1.bf16.msra.mxu0 0
    %1374 = vmatprep.subr.bf16.mxu0 0
    %1375 = vmatpush1.bf16.msra.mxu0 0
    %1376 = vmatprep.subr.bf16.mxu0 0
    %1377 = vmatpush1.bf16.msra.mxu0 0
    %1378 = vmatprep.subr.bf16.mxu0 0
    %1379 = vmatpush1.bf16.msra.mxu0 0
    %1380 = vmatprep.subr.bf16.mxu0 0
    %1381 = vmatpush1.bf16.msra.mxu0 0
    %1382 = vmatprep.subr.bf16.mxu0 0
    %1383 = vmatpush1.bf16.msra.mxu0 0
    %1384 = vmatprep.subr.bf16.mxu0 0
    %1385 = vmatpush1.bf16.msra.mxu0 0
    %1386 = vmatprep.subr.bf16.mxu0 0
    %1387 = vmatpush1.bf16.msra.mxu0 0
    %1388 = vmatprep.subr.bf16.mxu0 0
    %1389 = vmatpush1.bf16.msra.mxu0 0
    %1390 = vmatprep.subr.bf16.mxu0 0
    %1391 = vmatpush1.bf16.msra.mxu0 0
    %1392 = vmatprep.mubr.bf16.mxu0 0
    %1393 = vmatmul.mubr.bf16.gmra.mrb[0].mxu0 %v1358
    %v1394 = vpop.f32.mrb[0].mxu0
    %v1395 = vadd.f32 %v1356, %v1394
    %v1396 = vpop.f32.mrb[0].mxu0
    %v1397 = vpop.f32.mrb[0].mxu0
    %v1398 = vpop.f32.mrb[0].mxu0
    %1399 = vdwg.mxu0
    %v1400 = vtanh.pop %v1395
    %v1401 = vsub.f32 1.0, %v1304
    %v1402 = vmul.f32 %v1401, %v1400
    %v1403 = vmul.f32 %v1304, %v1252
    %v1404 = vadd.f32 %v1402, %v1403
    %1405 = vst.msk [vmem:[#allocation13] sm:$0xff] %vm148, %v1404
    %v1406 = vpack.c.bf16 %v1404, %v1404
    %v1407 = vld [vmem:[%s8] sm:$0xf]
    %v1408 = vld [vmem:[%s8 + $0x4] sm:$0xf]
    %v1409 = vld [vmem:[%s8 + $0x8] sm:$0xf]
    %v1410 = vld [vmem:[%s8 + $0xc] sm:$0xf]
    %v1411 = vld [vmem:[%s9] sm:$0x1]
    %v1413 = vlaneseq
    %v1414 = vshrl.u32 %v1413, 7
    %v1415 = vsub.s32 0, %v1414
    %v1416 = vrot.slane %v1411, %v1415
    %v1422 = vunpack.c.l.b16 %v1407
    %v1423 = vunpack.c.l.b16 %v1408
    %v1424 = vunpack.c.l.b16 %v1409
    %v1425 = vunpack.c.l.b16 %v1410
    %v1426 = vpack.c.b16 %v1423, %v1422
    %v1427 = vpack.c.b16 %v1425, %v1424
    %v1431 = vsel %vm148, %v1406, 0
    %1433 = vmatprep.subr.bf16.mxu0 0
    %1434 = vmatpush1.bf16.msra.mxu0 %v1426
    %1435 = vmatprep.subr.bf16.mxu0 0
    %1436 = vmatpush1.bf16.msra.mxu0 %v1427
    %1437 = vmatprep.subr.bf16.mxu0 0
    %1438 = vmatpush1.bf16.msra.mxu0 0
    %1439 = vmatprep.subr.bf16.mxu0 0
    %1440 = vmatpush1.bf16.msra.mxu0 0
    %1441 = vmatprep.subr.bf16.mxu0 0
    %1442 = vmatpush1.bf16.msra.mxu0 0
    %1443 = vmatprep.subr.bf16.mxu0 0
    %1444 = vmatpush1.bf16.msra.mxu0 0
    %1445 = vmatprep.subr.bf16.mxu0 0
    %1446 = vmatpush1.bf16.msra.mxu0 0
    %1447 = vmatprep.subr.bf16.mxu0 0
    %1448 = vmatpush1.bf16.msra.mxu0 0
    %1449 = vmatprep.subr.bf16.mxu0 0
    %1450 = vmatpush1.bf16.msra.mxu0 0
    %1451 = vmatprep.subr.bf16.mxu0 0
    %1452 = vmatpush1.bf16.msra.mxu0 0
    %1453 = vmatprep.subr.bf16.mxu0 0
    %1454 = vmatpush1.bf16.msra.mxu0 0
    %1455 = vmatprep.subr.bf16.mxu0 0
    %1456 = vmatpush1.bf16.msra.mxu0 0
    %1457 = vmatprep.subr.bf16.mxu0 0
    %1458 = vmatpush1.bf16.msra.mxu0 0
    %1459 = vmatprep.subr.bf16.mxu0 0
    %1460 = vmatpush1.bf16.msra.mxu0 0
    %1461 = vmatprep.subr.bf16.mxu0 0
    %1462 = vmatpush1.bf16.msra.mxu0 0
    %1463 = vmatprep.subr.bf16.mxu0 0
    %1464 = vmatpush1.bf16.msra.mxu0 0
    %1465 = vmatprep.mubr.bf16.mxu0 0
    %1466 = vmatmul.mubr.bf16.gmra.mrb[0].mxu0 %v1431
    %v1467 = vpop.f32.mrb[0].mxu0
    %v1468 = vadd.f32 %v1416, %v1467
    %v1469 = vpop.f32.mrb[0].mxu0
    %v1470 = vpop.f32.mrb[0].mxu0
    %v1471 = vpop.f32.mrb[0].mxu0
    %1472 = vdwg.mxu0
    %vm1473 = vcmask 15360
    %v1474 = vsel %vm1473, %v1468, -inf
    %1475 = vmax.xlane.f32.xlu0 %v1474
    %v1476 = vpop.xlane.xlu0 %1475
    %v1477 = vsub.f32 %v1468, %v1476
    %v1478 = vmul.f32 %v1477, 1.442695
    %v1479 = vpow.pop %v1478
    %v1480 = vsel %vm1473, %v1479, 0.0
    %1481 = vadd.xlane.f32.xlu0 %v1480
    %v1482 = vpop.xlane.xlu0 %1481
    %v1483 = vrcp.pop %v1482
    %v1484 = vmul.f32 %v1479, %v1483
    %1485 = vst.msk [vmem:[%s10] sm:$0xff] %vm1473, %v1484
    // Predicated region
    $region66: #{tpu_custom_call.1} parent=1 // pred_check
      _
    $region67: #{tpu_custom_call.1} parent=1 // pred_check_branch
      %1487 = sbr.rel (0) target = $region69
    $region68: #{tpu_custom_call.1} parent=1 // pred_region
      _
    $region69: #{tpu_custom_call.1} parent=1 // pred_fallthru
      _
    // Predicated region
    $region70: #{tpu_custom_call.1} parent=1 // pred_check
      _
    $region71: #{tpu_custom_call.1} parent=1 // pred_check_branch
      %1489 = sbr.rel (0) target = $region73
    $region72: #{tpu_custom_call.1} parent=1 // pred_region
      %s1491 = ssub.s32 128, 128
      %1492 = vsyncadd [#allocation4], %s1491
      %s1494 = sshll.u32 [#allocation13], 4
      %s1495 = int_to_ptr.vmem [resolvable:$true] %s1494
      %1497 = dma.vmem_to_hbm [thread:$0]  %s1495, 128, %s11, [#allocation4]
    $region73: #{tpu_custom_call.1} parent=1 // pred_fallthru
      _
    // Predicated region
    $region74: #{tpu_custom_call.1} parent=1 // pred_check
      _
    $region75: #{tpu_custom_call.1} parent=1 // pred_check_branch
      %1499 = sbr.rel (0) target = $region77
    $region76: #{tpu_custom_call.1} parent=1 // pred_region
      _
    $region77: #{tpu_custom_call.1} parent=1 // pred_fallthru
      _
    // Predicated region
    $region78: #{tpu_custom_call.1} parent=1 // pred_check
      _
    $region79: #{tpu_custom_call.1} parent=1 // pred_check_branch
      %1501 = sbr.rel (0) target = $region81
    $region80: #{tpu_custom_call.1} parent=1 // pred_region
      %1502 = dma.done [#allocation4], 128
    $region81: #{tpu_custom_call.1} parent=1 // pred_fallthru
      _
    %1503 = vsyncpa [#allocation3], 1
    %1504 = vsyncpa [#allocation6], 1
    %1505 = vsyncpa [#allocation9], 1
    %1506 = vsyncpa [#allocation12], 1
    %1507 = vsyncpa [#allocation4], 1

</llo_original>
